<compile_context>
chip_gen: v6e
topology: v6e:2x2x1
jax: 0.10.0
libtpu: 0.0.40
codegen_flags: <defaults>
</compile_context>

<pallas_src>
import functools

import jax
import jax.numpy as jnp
import numpy as np
from jax.experimental import pallas as pl
from jax.experimental.pallas import tpu as pltpu


def lstm_mlp_kernel(x_ref, wih_ref, whh_ref, b_ref,
                    w1_ref, b1_ref, w2_ref, b2_ref, w3_ref, b3_ref,
                    out_ref, hs_ref, *, seq_len, batch):
    """
    x_ref  : (S*B, I)   time-major rows (row index = t*B + b)
    wih_ref: (I, 4H)    gate columns pre-permuted to [i, f, o, g]
    whh_ref: (H, 4H)    same permutation
    b_ref  : (1, 4H)    b_ih + b_hh (pre-summed), same permutation
    w1, w2 : (H, H)     b1, b2: (1, H)
    w3_ref : (H, OP)    fc3 weight zero-padded to lane-dense OP (multiple of 128)
    b3_ref : (1, OP)
    out_ref: (S*B, OP)  lane-dense head output
    hs_ref : (S*B, H)   scratch: all hidden states for the batched MLP head
    """
    S, B = seq_len, batch
    H = whh_ref.shape[0]

    # ---- Phase 1: batched input projection (time-independent, one big matmul) ----
    gx = (jnp.dot(x_ref[...], wih_ref[...], preferred_element_type=jnp.float32)
          + b_ref[...])                                          # (S*B, 4H)

    # ---- Phase 2: serial LSTM recurrence (fully unrolled; h/c carried in vregs) ----
    whh = whh_ref[...]                                           # hoisted weight load
    h = jnp.zeros((B, H), jnp.float32)
    c = jnp.zeros((B, H), jnp.float32)
    for t in range(S):
        gates = gx[t * B:(t + 1) * B, :]                         # (B, 4H), static slice
        if t > 0:                                                # h == 0 at t == 0
            gates = gates + jnp.dot(h, whh, preferred_element_type=jnp.float32)
        sig = jax.nn.sigmoid(gates[:, :3 * H])                   # contiguous [i | f | o]
        i_g = sig[:, 0 * H:1 * H]
        f_g = sig[:, 1 * H:2 * H]
        o_g = sig[:, 2 * H:3 * H]
        g_g = jnp.tanh(gates[:, 3 * H:4 * H])
        c = f_g * c + i_g * g_g
        h = o_g * jnp.tanh(c)
        hs_ref[t * B:(t + 1) * B, :] = h                         # static-slice store

    # ---- Phase 3: batched MLP head on the whole (S*B, H) hidden slab ----
    hs = hs_ref[...]
    z = jnp.dot(hs, w1_ref[...], preferred_element_type=jnp.float32) + b1_ref[...]
    z = jnp.maximum(z, 0.0)                                      # ReLU (dropout = identity in eval)
    z = jnp.dot(z, w2_ref[...], preferred_element_type=jnp.float32) + b2_ref[...]
    z = jnp.maximum(z, 0.0)
    z = jnp.dot(z, w3_ref[...], preferred_element_type=jnp.float32) + b3_ref[...]
    out_ref[...] = jax.nn.sigmoid(z).astype(out_ref.dtype)       # lane-dense store


def lstm_forward(x, params):
    """x: (B, S, I) float32  ->  (B, S, O) float32"""
    B, S, I = x.shape
    H = params["w_hh"].shape[1]        # w_hh stored as (4H, H)
    O = params["w3"].shape[0]          # w3  stored as (O, H)
    OP = ((O + 127) // 128) * 128      # lane-dense padded head width

    def reorder(w):                    # gate columns [i, f, g, o] -> [i, f, o, g]
        i, f, g, o = jnp.split(w, 4, axis=-1)
        return jnp.concatenate([i, f, o, g], axis=-1)

    w_ih = reorder(jnp.transpose(params["w_ih"]))                        # (I, 4H)
    w_hh = reorder(jnp.transpose(params["w_hh"]))                        # (H, 4H)
    b_g = reorder((params["b_ih"] + params["b_hh"]).reshape(1, -1))      # (1, 4H)

    w3p = jnp.zeros((H, OP), jnp.float32).at[:, :O].set(jnp.transpose(params["w3"]))
    b3p = jnp.zeros((1, OP), jnp.float32).at[:, :O].set(params["b3"].reshape(1, -1))

    # Time-major, flattened to (S*B, I): row index = t*B + b.
    x_tm = jnp.transpose(x, (1, 0, 2)).reshape(S * B, I)

    # NOTE: on v6e/v7x the matmul operands could additionally be cast to bf16 (keeping
    # preferred_element_type=f32) for MXU throughput; kept f32 here so results match the
    # f32 reference tightly on all generations (v5e has no bf16 VPU/EUP path).
    args = (
        x_tm, w_ih, w_hh, b_g,
        jnp.transpose(params["w1"]), params["b1"].reshape(1, -1),
        jnp.transpose(params["w2"]), params["b2"].reshape(1, -1),
        w3p, b3p,
    )

    vmem = pl.BlockSpec(memory_space=pltpu.MemorySpace.VMEM)
    out_flat = pl.pallas_call(
        functools.partial(lstm_mlp_kernel, seq_len=S, batch=B),
        out_shape=jax.ShapeDtypeStruct((S * B, OP), jnp.float32),
        in_specs=[vmem] * len(args),
        out_specs=vmem,
        scratch_shapes=[pltpu.VMEM((S * B, H), jnp.float32)],   # hidden-state slab
    )(*args)

    out = out_flat[:, :O].reshape(S, B, O)                      # unpad + un-flatten
    return jnp.transpose(out, (1, 0, 2))                        # (B, S, O)


def init_params(key, input_size, hidden_size, out_size):
    ks = jax.random.split(key, 10)
    s = 1.0 / np.sqrt(hidden_size)
    u = lambda k, shape: jax.random.uniform(k, shape, jnp.float32, -s, s)
    return {
        "w_ih": u(ks[0], (4 * hidden_size, input_size)),
        "w_hh": u(ks[1], (4 * hidden_size, hidden_size)),
        "b_ih": u(ks[2], (4 * hidden_size,)),
        "b_hh": u(ks[3], (4 * hidden_size,)),
        "w1":   u(ks[4], (hidden_size, hidden_size)),
        "b1":   u(ks[5], (hidden_size,)),
        "w2":   u(ks[6], (hidden_size, hidden_size)),
        "b2":   u(ks[7], (hidden_size,)),
        "w3":   u(ks[8], (out_size, hidden_size)),
        "b3":   u(ks[9], (out_size,)),
    }


def reference_forward(x, p):
    """Pure-JAX reference mirroring torch semantics (eval mode)."""
    B, S, I = x.shape
    H = p["w_hh"].shape[1]

    def step(carry, x_t):
        h, c = carry
        gates = x_t @ p["w_ih"].T + p["b_ih"] + h @ p["w_hh"].T + p["b_hh"]
        i_g, f_g, g_g, o_g = jnp.split(gates, 4, axis=-1)
        c = jax.nn.sigmoid(f_g) * c + jax.nn.sigmoid(i_g) * jnp.tanh(g_g)
        h = jax.nn.sigmoid(o_g) * jnp.tanh(c)
        return (h, c), h

    h0 = jnp.zeros((B, H), jnp.float32)
    (_, _), hs = jax.lax.scan(step, (h0, h0), jnp.transpose(x, (1, 0, 2)))
    out = jnp.transpose(hs, (1, 0, 2))                   # (B, S, H)
    out = jnp.maximum(out @ p["w1"].T + p["b1"], 0.0)
    out = jnp.maximum(out @ p["w2"].T + p["b2"], 0.0)
    out = jax.nn.sigmoid(out @ p["w3"].T + p["b3"])
    return out


if __name__ == "__main__":
    B, S, I, H, O = 2, 8, 16, 32, 4

    key = jax.random.PRNGKey(0)
    k_x, k_p = jax.random.split(key)
    x = jax.random.normal(k_x, (B, S, I), jnp.float32)
    params = init_params(k_p, I, H, O)

    out = jax.block_until_ready(lstm_forward(x, params))
    ref = jax.block_until_ready(reference_forward(x, params))

    assert out.shape == (B, S, O), out.shape
    np.testing.assert_allclose(np.asarray(out), np.asarray(ref), atol=1e-5, rtol=1e-5)
    print("KERNEL_OK")
</pallas_src>

<mosaic_0001>
module attributes {stable_mosaic.version = 11 : i64} {
  func.func @lstm_mlp_kernel(%arg0: memref<16x16xf32, #tpu.memory_space<vmem>>, %arg1: memref<16x128xf32, #tpu.memory_space<vmem>>, %arg2: memref<32x128xf32, #tpu.memory_space<vmem>>, %arg3: memref<1x128xf32, #tpu.memory_space<vmem>>, %arg4: memref<32x32xf32, #tpu.memory_space<vmem>>, %arg5: memref<1x32xf32, #tpu.memory_space<vmem>>, %arg6: memref<32x32xf32, #tpu.memory_space<vmem>>, %arg7: memref<1x32xf32, #tpu.memory_space<vmem>>, %arg8: memref<32x128xf32, #tpu.memory_space<vmem>>, %arg9: memref<1x128xf32, #tpu.memory_space<vmem>>, %arg10: memref<16x128xf32, #tpu.memory_space<vmem>>, %arg11: memref<16x32xf32, #tpu.memory_space<vmem>>) attributes {dimension_semantics = [], scalar_prefetch = 0 : i64, scratch_operands = 1 : i64, tpu.core_type = #tpu.core_type<tc>} {
    %c0 = arith.constant 0 : index
    %c0_0 = arith.constant 0 : index
    %0 = vector.load %arg0[%c0, %c0_0] : memref<16x16xf32, #tpu.memory_space<vmem>>, vector<16x16xf32>
    %c0_1 = arith.constant 0 : index
    %c0_2 = arith.constant 0 : index
    %1 = vector.load %arg1[%c0_1, %c0_2] : memref<16x128xf32, #tpu.memory_space<vmem>>, vector<16x128xf32>
    %cst = arith.constant dense<0.000000e+00> : vector<16x128xf32>
    %2 = tpu.matmul %0, %1, %cst {dimension_numbers = #tpu.dot_dimension_numbers<[1], [0], [0], [1], [0, 0, 1, 1], [], []>} : vector<16x16xf32>, vector<16x128xf32>, vector<16x128xf32> -> vector<16x128xf32>
    %c0_3 = arith.constant 0 : index
    %c0_4 = arith.constant 0 : index
    %3 = vector.load %arg3[%c0_3, %c0_4] : memref<1x128xf32, #tpu.memory_space<vmem>>, vector<1x128xf32>
    %4 = vector.broadcast %3 : vector<1x128xf32> to vector<16x128xf32>
    %5 = arith.addf %2, %4 : vector<16x128xf32>
    %c0_5 = arith.constant 0 : index
    %c0_6 = arith.constant 0 : index
    %6 = vector.load %arg2[%c0_5, %c0_6] : memref<32x128xf32, #tpu.memory_space<vmem>>, vector<32x128xf32>
    %cst_7 = arith.constant 0.000000e+00 : f32
    %7 = vector.broadcast %cst_7 : f32 to vector<2x32xf32>
    %8 = vector.extract_strided_slice %5 {offsets = [0, 0], sizes = [2, 128], strides = [1, 1]} : vector<16x128xf32> to vector<2x128xf32>
    %9 = vector.extract_strided_slice %8 {offsets = [0, 0], sizes = [2, 96], strides = [1, 1]} : vector<2x128xf32> to vector<2x96xf32>
    %10 = arith.negf %9 : vector<2x96xf32>
    %11 = math.exp %10 : vector<2x96xf32>
    %cst_8 = arith.constant 1.000000e+00 : f32
    %12 = vector.broadcast %cst_8 : f32 to vector<2x96xf32>
    %13 = arith.addf %12, %11 : vector<2x96xf32>
    %14 = arith.divf %12, %13 : vector<2x96xf32>
    %15 = vector.extract_strided_slice %14 {offsets = [0, 0], sizes = [2, 32], strides = [1, 1]} : vector<2x96xf32> to vector<2x32xf32>
    %16 = vector.extract_strided_slice %14 {offsets = [0, 32], sizes = [2, 32], strides = [1, 1]} : vector<2x96xf32> to vector<2x32xf32>
    %17 = vector.extract_strided_slice %14 {offsets = [0, 64], sizes = [2, 32], strides = [1, 1]} : vector<2x96xf32> to vector<2x32xf32>
    %18 = vector.extract_strided_slice %8 {offsets = [0, 96], sizes = [2, 32], strides = [1, 1]} : vector<2x128xf32> to vector<2x32xf32>
    %19 = math.tanh %18 : vector<2x32xf32>
    %20 = arith.mulf %16, %7 : vector<2x32xf32>
    %21 = arith.mulf %15, %19 : vector<2x32xf32>
    %22 = arith.addf %20, %21 : vector<2x32xf32>
    %23 = math.tanh %22 : vector<2x32xf32>
    %24 = arith.mulf %17, %23 : vector<2x32xf32>
    %c0_9 = arith.constant 0 : index
    %c0_10 = arith.constant 0 : index
    %25 = vector.load %arg11[%c0_9, %c0_10] : memref<16x32xf32, #tpu.memory_space<vmem>>, vector<2x32xf32>
    tpu.vector_store %arg11[%c0_9, %c0_10], %24 {strides = array<i32>} : memref<16x32xf32, #tpu.memory_space<vmem>>, vector<2x32xf32>,
    %26 = vector.extract_strided_slice %5 {offsets = [2, 0], sizes = [2, 128], strides = [1, 1]} : vector<16x128xf32> to vector<2x128xf32>
    %cst_11 = arith.constant dense<0.000000e+00> : vector<2x128xf32>
    %27 = tpu.matmul %24, %6, %cst_11 {dimension_numbers = #tpu.dot_dimension_numbers<[1], [0], [0], [1], [0, 0, 1, 1], [], []>} : vector<2x32xf32>, vector<32x128xf32>, vector<2x128xf32> -> vector<2x128xf32>
    %28 = arith.addf %26, %27 : vector<2x128xf32>
    %29 = vector.extract_strided_slice %28 {offsets = [0, 0], sizes = [2, 96], strides = [1, 1]} : vector<2x128xf32> to vector<2x96xf32>
    %30 = arith.negf %29 : vector<2x96xf32>
    %31 = math.exp %30 : vector<2x96xf32>
    %cst_12 = arith.constant 1.000000e+00 : f32
    %32 = vector.broadcast %cst_12 : f32 to vector<2x96xf32>
    %33 = arith.addf %32, %31 : vector<2x96xf32>
    %34 = arith.divf %32, %33 : vector<2x96xf32>
    %35 = vector.extract_strided_slice %34 {offsets = [0, 0], sizes = [2, 32], strides = [1, 1]} : vector<2x96xf32> to vector<2x32xf32>
    %36 = vector.extract_strided_slice %34 {offsets = [0, 32], sizes = [2, 32], strides = [1, 1]} : vector<2x96xf32> to vector<2x32xf32>
    %37 = vector.extract_strided_slice %34 {offsets = [0, 64], sizes = [2, 32], strides = [1, 1]} : vector<2x96xf32> to vector<2x32xf32>
    %38 = vector.extract_strided_slice %28 {offsets = [0, 96], sizes = [2, 32], strides = [1, 1]} : vector<2x128xf32> to vector<2x32xf32>
    %39 = math.tanh %38 : vector<2x32xf32>
    %40 = arith.mulf %36, %22 : vector<2x32xf32>
    %41 = arith.mulf %35, %39 : vector<2x32xf32>
    %42 = arith.addf %40, %41 : vector<2x32xf32>
    %43 = math.tanh %42 : vector<2x32xf32>
    %44 = arith.mulf %37, %43 : vector<2x32xf32>
    %c2 = arith.constant 2 : index
    %c0_13 = arith.constant 0 : index
    %45 = vector.load %arg11[%c2, %c0_13] : memref<16x32xf32, #tpu.memory_space<vmem>>, vector<2x32xf32>
    tpu.vector_store %arg11[%c2, %c0_13], %44 {strides = array<i32>} : memref<16x32xf32, #tpu.memory_space<vmem>>, vector<2x32xf32>,
    %46 = vector.extract_strided_slice %5 {offsets = [4, 0], sizes = [2, 128], strides = [1, 1]} : vector<16x128xf32> to vector<2x128xf32>
    %cst_14 = arith.constant dense<0.000000e+00> : vector<2x128xf32>
    %47 = tpu.matmul %44, %6, %cst_14 {dimension_numbers = #tpu.dot_dimension_numbers<[1], [0], [0], [1], [0, 0, 1, 1], [], []>} : vector<2x32xf32>, vector<32x128xf32>, vector<2x128xf32> -> vector<2x128xf32>
    %48 = arith.addf %46, %47 : vector<2x128xf32>
    %49 = vector.extract_strided_slice %48 {offsets = [0, 0], sizes = [2, 96], strides = [1, 1]} : vector<2x128xf32> to vector<2x96xf32>
    %50 = arith.negf %49 : vector<2x96xf32>
    %51 = math.exp %50 : vector<2x96xf32>
    %cst_15 = arith.constant 1.000000e+00 : f32
    %52 = vector.broadcast %cst_15 : f32 to vector<2x96xf32>
    %53 = arith.addf %52, %51 : vector<2x96xf32>
    %54 = arith.divf %52, %53 : vector<2x96xf32>
    %55 = vector.extract_strided_slice %54 {offsets = [0, 0], sizes = [2, 32], strides = [1, 1]} : vector<2x96xf32> to vector<2x32xf32>
    %56 = vector.extract_strided_slice %54 {offsets = [0, 32], sizes = [2, 32], strides = [1, 1]} : vector<2x96xf32> to vector<2x32xf32>
    %57 = vector.extract_strided_slice %54 {offsets = [0, 64], sizes = [2, 32], strides = [1, 1]} : vector<2x96xf32> to vector<2x32xf32>
    %58 = vector.extract_strided_slice %48 {offsets = [0, 96], sizes = [2, 32], strides = [1, 1]} : vector<2x128xf32> to vector<2x32xf32>
    %59 = math.tanh %58 : vector<2x32xf32>
    %60 = arith.mulf %56, %42 : vector<2x32xf32>
    %61 = arith.mulf %55, %59 : vector<2x32xf32>
    %62 = arith.addf %60, %61 : vector<2x32xf32>
    %63 = math.tanh %62 : vector<2x32xf32>
    %64 = arith.mulf %57, %63 : vector<2x32xf32>
    %c4 = arith.constant 4 : index
    %c0_16 = arith.constant 0 : index
    %65 = vector.load %arg11[%c4, %c0_16] : memref<16x32xf32, #tpu.memory_space<vmem>>, vector<2x32xf32>
    tpu.vector_store %arg11[%c4, %c0_16], %64 {strides = array<i32>} : memref<16x32xf32, #tpu.memory_space<vmem>>, vector<2x32xf32>,
    %66 = vector.extract_strided_slice %5 {offsets = [6, 0], sizes = [2, 128], strides = [1, 1]} : vector<16x128xf32> to vector<2x128xf32>
    %cst_17 = arith.constant dense<0.000000e+00> : vector<2x128xf32>
    %67 = tpu.matmul %64, %6, %cst_17 {dimension_numbers = #tpu.dot_dimension_numbers<[1], [0], [0], [1], [0, 0, 1, 1], [], []>} : vector<2x32xf32>, vector<32x128xf32>, vector<2x128xf32> -> vector<2x128xf32>
    %68 = arith.addf %66, %67 : vector<2x128xf32>
    %69 = vector.extract_strided_slice %68 {offsets = [0, 0], sizes = [2, 96], strides = [1, 1]} : vector<2x128xf32> to vector<2x96xf32>
    %70 = arith.negf %69 : vector<2x96xf32>
    %71 = math.exp %70 : vector<2x96xf32>
    %cst_18 = arith.constant 1.000000e+00 : f32
    %72 = vector.broadcast %cst_18 : f32 to vector<2x96xf32>
    %73 = arith.addf %72, %71 : vector<2x96xf32>
    %74 = arith.divf %72, %73 : vector<2x96xf32>
    %75 = vector.extract_strided_slice %74 {offsets = [0, 0], sizes = [2, 32], strides = [1, 1]} : vector<2x96xf32> to vector<2x32xf32>
    %76 = vector.extract_strided_slice %74 {offsets = [0, 32], sizes = [2, 32], strides = [1, 1]} : vector<2x96xf32> to vector<2x32xf32>
    %77 = vector.extract_strided_slice %74 {offsets = [0, 64], sizes = [2, 32], strides = [1, 1]} : vector<2x96xf32> to vector<2x32xf32>
    %78 = vector.extract_strided_slice %68 {offsets = [0, 96], sizes = [2, 32], strides = [1, 1]} : vector<2x128xf32> to vector<2x32xf32>
    %79 = math.tanh %78 : vector<2x32xf32>
    %80 = arith.mulf %76, %62 : vector<2x32xf32>
    %81 = arith.mulf %75, %79 : vector<2x32xf32>
    %82 = arith.addf %80, %81 : vector<2x32xf32>
    %83 = math.tanh %82 : vector<2x32xf32>
    %84 = arith.mulf %77, %83 : vector<2x32xf32>
    %c6 = arith.constant 6 : index
    %c0_19 = arith.constant 0 : index
    %85 = vector.load %arg11[%c6, %c0_19] : memref<16x32xf32, #tpu.memory_space<vmem>>, vector<2x32xf32>
    tpu.vector_store %arg11[%c6, %c0_19], %84 {strides = array<i32>} : memref<16x32xf32, #tpu.memory_space<vmem>>, vector<2x32xf32>,
    %86 = vector.extract_strided_slice %5 {offsets = [8, 0], sizes = [2, 128], strides = [1, 1]} : vector<16x128xf32> to vector<2x128xf32>
    %cst_20 = arith.constant dense<0.000000e+00> : vector<2x128xf32>
    %87 = tpu.matmul %84, %6, %cst_20 {dimension_numbers = #tpu.dot_dimension_numbers<[1], [0], [0], [1], [0, 0, 1, 1], [], []>} : vector<2x32xf32>, vector<32x128xf32>, vector<2x128xf32> -> vector<2x128xf32>
    %88 = arith.addf %86, %87 : vector<2x128xf32>
    %89 = vector.extract_strided_slice %88 {offsets = [0, 0], sizes = [2, 96], strides = [1, 1]} : vector<2x128xf32> to vector<2x96xf32>
    %90 = arith.negf %89 : vector<2x96xf32>
    %91 = math.exp %90 : vector<2x96xf32>
    %cst_21 = arith.constant 1.000000e+00 : f32
    %92 = vector.broadcast %cst_21 : f32 to vector<2x96xf32>
    %93 = arith.addf %92, %91 : vector<2x96xf32>
    %94 = arith.divf %92, %93 : vector<2x96xf32>
    %95 = vector.extract_strided_slice %94 {offsets = [0, 0], sizes = [2, 32], strides = [1, 1]} : vector<2x96xf32> to vector<2x32xf32>
    %96 = vector.extract_strided_slice %94 {offsets = [0, 32], sizes = [2, 32], strides = [1, 1]} : vector<2x96xf32> to vector<2x32xf32>
    %97 = vector.extract_strided_slice %94 {offsets = [0, 64], sizes = [2, 32], strides = [1, 1]} : vector<2x96xf32> to vector<2x32xf32>
    %98 = vector.extract_strided_slice %88 {offsets = [0, 96], sizes = [2, 32], strides = [1, 1]} : vector<2x128xf32> to vector<2x32xf32>
    %99 = math.tanh %98 : vector<2x32xf32>
    %100 = arith.mulf %96, %82 : vector<2x32xf32>
    %101 = arith.mulf %95, %99 : vector<2x32xf32>
    %102 = arith.addf %100, %101 : vector<2x32xf32>
    %103 = math.tanh %102 : vector<2x32xf32>
    %104 = arith.mulf %97, %103 : vector<2x32xf32>
    %c8 = arith.constant 8 : index
    %c0_22 = arith.constant 0 : index
    %105 = vector.load %arg11[%c8, %c0_22] : memref<16x32xf32, #tpu.memory_space<vmem>>, vector<2x32xf32>
    tpu.vector_store %arg11[%c8, %c0_22], %104 {strides = array<i32>} : memref<16x32xf32, #tpu.memory_space<vmem>>, vector<2x32xf32>,
    %106 = vector.extract_strided_slice %5 {offsets = [10, 0], sizes = [2, 128], strides = [1, 1]} : vector<16x128xf32> to vector<2x128xf32>
    %cst_23 = arith.constant dense<0.000000e+00> : vector<2x128xf32>
    %107 = tpu.matmul %104, %6, %cst_23 {dimension_numbers = #tpu.dot_dimension_numbers<[1], [0], [0], [1], [0, 0, 1, 1], [], []>} : vector<2x32xf32>, vector<32x128xf32>, vector<2x128xf32> -> vector<2x128xf32>
    %108 = arith.addf %106, %107 : vector<2x128xf32>
    %109 = vector.extract_strided_slice %108 {offsets = [0, 0], sizes = [2, 96], strides = [1, 1]} : vector<2x128xf32> to vector<2x96xf32>
    %110 = arith.negf %109 : vector<2x96xf32>
    %111 = math.exp %110 : vector<2x96xf32>
    %cst_24 = arith.constant 1.000000e+00 : f32
    %112 = vector.broadcast %cst_24 : f32 to vector<2x96xf32>
    %113 = arith.addf %112, %111 : vector<2x96xf32>
    %114 = arith.divf %112, %113 : vector<2x96xf32>
    %115 = vector.extract_strided_slice %114 {offsets = [0, 0], sizes = [2, 32], strides = [1, 1]} : vector<2x96xf32> to vector<2x32xf32>
    %116 = vector.extract_strided_slice %114 {offsets = [0, 32], sizes = [2, 32], strides = [1, 1]} : vector<2x96xf32> to vector<2x32xf32>
    %117 = vector.extract_strided_slice %114 {offsets = [0, 64], sizes = [2, 32], strides = [1, 1]} : vector<2x96xf32> to vector<2x32xf32>
    %118 = vector.extract_strided_slice %108 {offsets = [0, 96], sizes = [2, 32], strides = [1, 1]} : vector<2x128xf32> to vector<2x32xf32>
    %119 = math.tanh %118 : vector<2x32xf32>
    %120 = arith.mulf %116, %102 : vector<2x32xf32>
    %121 = arith.mulf %115, %119 : vector<2x32xf32>
    %122 = arith.addf %120, %121 : vector<2x32xf32>
    %123 = math.tanh %122 : vector<2x32xf32>
    %124 = arith.mulf %117, %123 : vector<2x32xf32>
    %c10 = arith.constant 10 : index
    %c0_25 = arith.constant 0 : index
    %125 = vector.load %arg11[%c10, %c0_25] : memref<16x32xf32, #tpu.memory_space<vmem>>, vector<2x32xf32>
    tpu.vector_store %arg11[%c10, %c0_25], %124 {strides = array<i32>} : memref<16x32xf32, #tpu.memory_space<vmem>>, vector<2x32xf32>,
    %126 = vector.extract_strided_slice %5 {offsets = [12, 0], sizes = [2, 128], strides = [1, 1]} : vector<16x128xf32> to vector<2x128xf32>
    %cst_26 = arith.constant dense<0.000000e+00> : vector<2x128xf32>
    %127 = tpu.matmul %124, %6, %cst_26 {dimension_numbers = #tpu.dot_dimension_numbers<[1], [0], [0], [1], [0, 0, 1, 1], [], []>} : vector<2x32xf32>, vector<32x128xf32>, vector<2x128xf32> -> vector<2x128xf32>
    %128 = arith.addf %126, %127 : vector<2x128xf32>
    %129 = vector.extract_strided_slice %128 {offsets = [0, 0], sizes = [2, 96], strides = [1, 1]} : vector<2x128xf32> to vector<2x96xf32>
    %130 = arith.negf %129 : vector<2x96xf32>
    %131 = math.exp %130 : vector<2x96xf32>
    %cst_27 = arith.constant 1.000000e+00 : f32
    %132 = vector.broadcast %cst_27 : f32 to vector<2x96xf32>
    %133 = arith.addf %132, %131 : vector<2x96xf32>
    %134 = arith.divf %132, %133 : vector<2x96xf32>
    %135 = vector.extract_strided_slice %134 {offsets = [0, 0], sizes = [2, 32], strides = [1, 1]} : vector<2x96xf32> to vector<2x32xf32>
    %136 = vector.extract_strided_slice %134 {offsets = [0, 32], sizes = [2, 32], strides = [1, 1]} : vector<2x96xf32> to vector<2x32xf32>
    %137 = vector.extract_strided_slice %134 {offsets = [0, 64], sizes = [2, 32], strides = [1, 1]} : vector<2x96xf32> to vector<2x32xf32>
    %138 = vector.extract_strided_slice %128 {offsets = [0, 96], sizes = [2, 32], strides = [1, 1]} : vector<2x128xf32> to vector<2x32xf32>
    %139 = math.tanh %138 : vector<2x32xf32>
    %140 = arith.mulf %136, %122 : vector<2x32xf32>
    %141 = arith.mulf %135, %139 : vector<2x32xf32>
    %142 = arith.addf %140, %141 : vector<2x32xf32>
    %143 = math.tanh %142 : vector<2x32xf32>
    %144 = arith.mulf %137, %143 : vector<2x32xf32>
    %c12 = arith.constant 12 : index
    %c0_28 = arith.constant 0 : index
    %145 = vector.load %arg11[%c12, %c0_28] : memref<16x32xf32, #tpu.memory_space<vmem>>, vector<2x32xf32>
    tpu.vector_store %arg11[%c12, %c0_28], %144 {strides = array<i32>} : memref<16x32xf32, #tpu.memory_space<vmem>>, vector<2x32xf32>,
    %146 = vector.extract_strided_slice %5 {offsets = [14, 0], sizes = [2, 128], strides = [1, 1]} : vector<16x128xf32> to vector<2x128xf32>
    %cst_29 = arith.constant dense<0.000000e+00> : vector<2x128xf32>
    %147 = tpu.matmul %144, %6, %cst_29 {dimension_numbers = #tpu.dot_dimension_numbers<[1], [0], [0], [1], [0, 0, 1, 1], [], []>} : vector<2x32xf32>, vector<32x128xf32>, vector<2x128xf32> -> vector<2x128xf32>
    %148 = arith.addf %146, %147 : vector<2x128xf32>
    %149 = vector.extract_strided_slice %148 {offsets = [0, 0], sizes = [2, 96], strides = [1, 1]} : vector<2x128xf32> to vector<2x96xf32>
    %150 = arith.negf %149 : vector<2x96xf32>
    %151 = math.exp %150 : vector<2x96xf32>
    %cst_30 = arith.constant 1.000000e+00 : f32
    %152 = vector.broadcast %cst_30 : f32 to vector<2x96xf32>
    %153 = arith.addf %152, %151 : vector<2x96xf32>
    %154 = arith.divf %152, %153 : vector<2x96xf32>
    %155 = vector.extract_strided_slice %154 {offsets = [0, 0], sizes = [2, 32], strides = [1, 1]} : vector<2x96xf32> to vector<2x32xf32>
    %156 = vector.extract_strided_slice %154 {offsets = [0, 32], sizes = [2, 32], strides = [1, 1]} : vector<2x96xf32> to vector<2x32xf32>
    %157 = vector.extract_strided_slice %154 {offsets = [0, 64], sizes = [2, 32], strides = [1, 1]} : vector<2x96xf32> to vector<2x32xf32>
    %158 = vector.extract_strided_slice %148 {offsets = [0, 96], sizes = [2, 32], strides = [1, 1]} : vector<2x128xf32> to vector<2x32xf32>
    %159 = math.tanh %158 : vector<2x32xf32>
    %160 = arith.mulf %156, %142 : vector<2x32xf32>
    %161 = arith.mulf %155, %159 : vector<2x32xf32>
    %162 = arith.addf %160, %161 : vector<2x32xf32>
    %163 = math.tanh %162 : vector<2x32xf32>
    %164 = arith.mulf %157, %163 : vector<2x32xf32>
    %c14 = arith.constant 14 : index
    %c0_31 = arith.constant 0 : index
    %165 = vector.load %arg11[%c14, %c0_31] : memref<16x32xf32, #tpu.memory_space<vmem>>, vector<2x32xf32>
    tpu.vector_store %arg11[%c14, %c0_31], %164 {strides = array<i32>} : memref<16x32xf32, #tpu.memory_space<vmem>>, vector<2x32xf32>,
    %c0_32 = arith.constant 0 : index
    %c0_33 = arith.constant 0 : index
    %166 = vector.load %arg11[%c0_32, %c0_33] : memref<16x32xf32, #tpu.memory_space<vmem>>, vector<16x32xf32>
    %c0_34 = arith.constant 0 : index
    %c0_35 = arith.constant 0 : index
    %167 = vector.load %arg4[%c0_34, %c0_35] : memref<32x32xf32, #tpu.memory_space<vmem>>, vector<32x32xf32>
    %cst_36 = arith.constant dense<0.000000e+00> : vector<16x32xf32>
    %168 = tpu.matmul %166, %167, %cst_36 {dimension_numbers = #tpu.dot_dimension_numbers<[1], [0], [0], [1], [0, 0, 1, 1], [], []>} : vector<16x32xf32>, vector<32x32xf32>, vector<16x32xf32> -> vector<16x32xf32>
    %c0_37 = arith.constant 0 : index
    %c0_38 = arith.constant 0 : index
    %169 = vector.load %arg5[%c0_37, %c0_38] : memref<1x32xf32, #tpu.memory_space<vmem>>, vector<1x32xf32>
    %170 = vector.broadcast %169 : vector<1x32xf32> to vector<16x32xf32>
    %171 = arith.addf %168, %170 : vector<16x32xf32>
    %cst_39 = arith.constant 0.000000e+00 : f32
    %172 = vector.broadcast %cst_39 : f32 to vector<16x32xf32>
    %173 = arith.maximumf %171, %172 : vector<16x32xf32>
    %c0_40 = arith.constant 0 : index
    %c0_41 = arith.constant 0 : index
    %174 = vector.load %arg6[%c0_40, %c0_41] : memref<32x32xf32, #tpu.memory_space<vmem>>, vector<32x32xf32>
    %cst_42 = arith.constant dense<0.000000e+00> : vector<16x32xf32>
    %175 = tpu.matmul %173, %174, %cst_42 {dimension_numbers = #tpu.dot_dimension_numbers<[1], [0], [0], [1], [0, 0, 1, 1], [], []>} : vector<16x32xf32>, vector<32x32xf32>, vector<16x32xf32> -> vector<16x32xf32>
    %c0_43 = arith.constant 0 : index
    %c0_44 = arith.constant 0 : index
    %176 = vector.load %arg7[%c0_43, %c0_44] : memref<1x32xf32, #tpu.memory_space<vmem>>, vector<1x32xf32>
    %177 = vector.broadcast %176 : vector<1x32xf32> to vector<16x32xf32>
    %178 = arith.addf %175, %177 : vector<16x32xf32>
    %cst_45 = arith.constant 0.000000e+00 : f32
    %179 = vector.broadcast %cst_45 : f32 to vector<16x32xf32>
    %180 = arith.maximumf %178, %179 : vector<16x32xf32>
    %c0_46 = arith.constant 0 : index
    %c0_47 = arith.constant 0 : index
    %181 = vector.load %arg8[%c0_46, %c0_47] : memref<32x128xf32, #tpu.memory_space<vmem>>, vector<32x128xf32>
    %cst_48 = arith.constant dense<0.000000e+00> : vector<16x128xf32>
    %182 = tpu.matmul %180, %181, %cst_48 {dimension_numbers = #tpu.dot_dimension_numbers<[1], [0], [0], [1], [0, 0, 1, 1], [], []>} : vector<16x32xf32>, vector<32x128xf32>, vector<16x128xf32> -> vector<16x128xf32>
    %c0_49 = arith.constant 0 : index
    %c0_50 = arith.constant 0 : index
    %183 = vector.load %arg9[%c0_49, %c0_50] : memref<1x128xf32, #tpu.memory_space<vmem>>, vector<1x128xf32>
    %184 = vector.broadcast %183 : vector<1x128xf32> to vector<16x128xf32>
    %185 = arith.addf %182, %184 : vector<16x128xf32>
    %186 = arith.negf %185 : vector<16x128xf32>
    %187 = math.exp %186 : vector<16x128xf32>
    %cst_51 = arith.constant 1.000000e+00 : f32
    %188 = vector.broadcast %cst_51 : f32 to vector<16x128xf32>
    %189 = arith.addf %188, %187 : vector<16x128xf32>
    %190 = arith.divf %188, %189 : vector<16x128xf32>
    %c0_52 = arith.constant 0 : index
    %c0_53 = arith.constant 0 : index
    %191 = vector.load %arg10[%c0_52, %c0_53] : memref<16x128xf32, #tpu.memory_space<vmem>>, vector<16x128xf32>
    tpu.vector_store %arg10[%c0_52, %c0_53], %190 {strides = array<i32>} : memref<16x128xf32, #tpu.memory_space<vmem>>, vector<16x128xf32>,
    return
  }
}

</mosaic_0001>

<llo_original>
// kernel: tpu_custom_call.1
$region0: #{tpu_custom_call.1}
  #allocation0 [shape = 'u32[]', space=smem, size = 0x4, offset = 0x4, fixed_abs, tag = 'smem constant byte address 0x4 - core index']
  #allocation1 [shape = 'u32[144,128]{1,0:T(1,128)}', space=vmem, size = 0x12000, scoped, tag = 'internal scratch']
  #allocation2 [shape = 'f32[16,32]{1,0:T(8,128)}', space=vmem, size = 0x2000, scoped, tag = 'scratch operand']
  %s0 = inlined_call_operand.hbm [shape: f32[16,16], index: 0, kind: input, shape index: {}]
  %s1 = inlined_call_operand.hbm [shape: f32[16,128], index: 1, kind: input, shape index: {}]
  %s2 = inlined_call_operand.hbm [shape: f32[32,128], index: 2, kind: input, shape index: {}]
  %s3 = inlined_call_operand.vmem [shape: f32[1,128], index: 3, kind: input, shape index: {}]
  %s4 = inlined_call_operand.hbm [shape: f32[32,32], index: 4, kind: input, shape index: {}]
  %s5 = inlined_call_operand.vmem [shape: f32[1,32], index: 5, kind: input, shape index: {}]
  %s6 = inlined_call_operand.hbm [shape: f32[32,32], index: 6, kind: input, shape index: {}]
  %s7 = inlined_call_operand.vmem [shape: f32[1,32], index: 7, kind: input, shape index: {}]
  %s8 = inlined_call_operand.hbm [shape: f32[32,128], index: 8, kind: input, shape index: {}]
  %s9 = inlined_call_operand.vmem [shape: f32[1,128], index: 9, kind: input, shape index: {}]
  %s10 = inlined_call_operand.hbm [shape: f32[16,128], index: 10, kind: output, shape index: {}]
  %s11 = sld [smem:[#allocation0]]
  $region74: #{tpu_custom_call.1} parent=0
    _
  %s13 = ssub.s32 1, %s11
  %s14 = scalar_select 0, %s13, %s11
  $region1: #{tpu_custom_call.1} parent=0
    #allocation3 [shape = 'u8[8192]{0}', space=vmem, size = 0x2000, scoped, tag = 'input window, operand 0, single buffered']
    #allocation4 [shape = 's32[1]{0}', space=sflag, size = 0x4, scoped, tag = 'scoped memory for tpu_custom_call.1']
    #allocation5 [shape = 's32[1]{0}', space=sflag, size = 0x4, scoped, tag = 'scoped memory for tpu_custom_call.1']
    #allocation6 [shape = 'u8[8192]{0}', space=vmem, size = 0x2000, scoped, tag = 'input window, operand 1, single buffered']
    #allocation7 [shape = 's32[1]{0}', space=sflag, size = 0x4, scoped, tag = 'scoped memory for tpu_custom_call.1']
    #allocation8 [shape = 'u8[16384]{0}', space=vmem, size = 0x4000, scoped, tag = 'input window, operand 2, single buffered']
    #allocation9 [shape = 'u8[16384]{0}', space=vmem, size = 0x4000, scoped, tag = 'input window, operand 4, single buffered']
    #allocation10 [shape = 's32[1]{0}', space=sflag, size = 0x4, scoped, tag = 'scoped memory for tpu_custom_call.1']
    #allocation11 [shape = 'u8[16384]{0}', space=vmem, size = 0x4000, scoped, tag = 'input window, operand 6, single buffered']
    #allocation12 [shape = 'u8[16384]{0}', space=vmem, size = 0x4000, scoped, tag = 'input window, operand 8, single buffered']
    #allocation13 [shape = 's32[1]{0}', space=sflag, size = 0x4, scoped, tag = 'scoped memory for tpu_custom_call.1']
    #allocation14 [shape = 'u8[8192]{0}', space=vmem, size = 0x2000, scoped, tag = 'output window, operand 0, single buffered']
    %15 = vsyncpa [#allocation4], 0
    %16 = vsyncpa [#allocation7], 0
    %17 = vsyncpa [#allocation10], 0
    %18 = vsyncpa [#allocation13], 0
    %19 = vsyncpa [#allocation5], 0
    // Predicated region
    $region2: #{tpu_custom_call.1} parent=1 // pred_check
      _
    $region3: #{tpu_custom_call.1} parent=1 // pred_check_branch
      %21 = sbr.rel (0) target = $region5
    $region4: #{tpu_custom_call.1} parent=1 // pred_region
      %s23 = ssub.s32 256, 256
      %24 = vsyncadd [#allocation4], %s23
      %s25 = sshll.u32 [#allocation3], 4
      %s26 = int_to_ptr.vmem [resolvable:$true] %s25
      %31 = dma.hbm_to_vmem [thread:$0]  %s0, 256, %s26, [#allocation4], 128, 128, 8
    $region5: #{tpu_custom_call.1} parent=1 // pred_fallthru
      _
    // Predicated region
    $region6: #{tpu_custom_call.1} parent=1 // pred_check
      _
    $region7: #{tpu_custom_call.1} parent=1 // pred_check_branch
      %33 = sbr.rel (0) target = $region9
    $region8: #{tpu_custom_call.1} parent=1 // pred_region
      %s35 = ssub.s32 256, 256
      %36 = vsyncadd [#allocation7], %s35
      %s37 = sshll.u32 [#allocation6], 4
      %s38 = int_to_ptr.vmem [resolvable:$true] %s37
      %43 = dma.hbm_to_vmem [thread:$0]  %s1, 256, %s38, [#allocation7], 128, 128, 8
    $region9: #{tpu_custom_call.1} parent=1 // pred_fallthru
      _
    // Predicated region
    $region10: #{tpu_custom_call.1} parent=1 // pred_check
      _
    $region11: #{tpu_custom_call.1} parent=1 // pred_check_branch
      %45 = sbr.rel (0) target = $region13
    $region12: #{tpu_custom_call.1} parent=1 // pred_region
      %s47 = ssub.s32 512, 512
      %48 = vsyncadd [#allocation7], %s47
      %s49 = sshll.u32 [#allocation8], 4
      %s50 = int_to_ptr.vmem [resolvable:$true] %s49
      %55 = dma.hbm_to_vmem [thread:$0]  %s2, 512, %s50, [#allocation7], 128, 128, 8
    $region13: #{tpu_custom_call.1} parent=1 // pred_fallthru
      _
    // Predicated region
    $region14: #{tpu_custom_call.1} parent=1 // pred_check
      _
    $region15: #{tpu_custom_call.1} parent=1 // pred_check_branch
      %57 = sbr.rel (0) target = $region17
    $region16: #{tpu_custom_call.1} parent=1 // pred_region
      _
    $region17: #{tpu_custom_call.1} parent=1 // pred_fallthru
      _
    // Predicated region
    $region18: #{tpu_custom_call.1} parent=1 // pred_check
      _
    $region19: #{tpu_custom_call.1} parent=1 // pred_check_branch
      %59 = sbr.rel (0) target = $region21
    $region20: #{tpu_custom_call.1} parent=1 // pred_region
      %s61 = ssub.s32 512, 512
      %62 = vsyncadd [#allocation10], %s61
      %s63 = sshll.u32 [#allocation9], 4
      %s64 = int_to_ptr.vmem [resolvable:$true] %s63
      %69 = dma.hbm_to_vmem [thread:$0]  %s4, 512, %s64, [#allocation10], 128, 128, 8
    $region21: #{tpu_custom_call.1} parent=1 // pred_fallthru
      _
    // Predicated region
    $region22: #{tpu_custom_call.1} parent=1 // pred_check
      _
    $region23: #{tpu_custom_call.1} parent=1 // pred_check_branch
      %71 = sbr.rel (0) target = $region25
    $region24: #{tpu_custom_call.1} parent=1 // pred_region
      _
    $region25: #{tpu_custom_call.1} parent=1 // pred_fallthru
      _
    // Predicated region
    $region26: #{tpu_custom_call.1} parent=1 // pred_check
      _
    $region27: #{tpu_custom_call.1} parent=1 // pred_check_branch
      %73 = sbr.rel (0) target = $region29
    $region28: #{tpu_custom_call.1} parent=1 // pred_region
      %s75 = ssub.s32 512, 512
      %76 = vsyncadd [#allocation10], %s75
      %s77 = sshll.u32 [#allocation11], 4
      %s78 = int_to_ptr.vmem [resolvable:$true] %s77
      %83 = dma.hbm_to_vmem [thread:$0]  %s6, 512, %s78, [#allocation10], 128, 128, 8
    $region29: #{tpu_custom_call.1} parent=1 // pred_fallthru
      _
    // Predicated region
    $region30: #{tpu_custom_call.1} parent=1 // pred_check
      _
    $region31: #{tpu_custom_call.1} parent=1 // pred_check_branch
      %85 = sbr.rel (0) target = $region33
    $region32: #{tpu_custom_call.1} parent=1 // pred_region
      _
    $region33: #{tpu_custom_call.1} parent=1 // pred_fallthru
      _
    // Predicated region
    $region34: #{tpu_custom_call.1} parent=1 // pred_check
      _
    $region35: #{tpu_custom_call.1} parent=1 // pred_check_branch
      %87 = sbr.rel (0) target = $region37
    $region36: #{tpu_custom_call.1} parent=1 // pred_region
      %s89 = ssub.s32 512, 512
      %90 = vsyncadd [#allocation13], %s89
      %s91 = sshll.u32 [#allocation12], 4
      %s92 = int_to_ptr.vmem [resolvable:$true] %s91
      %97 = dma.hbm_to_vmem [thread:$0]  %s8, 512, %s92, [#allocation13], 128, 128, 8
    $region37: #{tpu_custom_call.1} parent=1 // pred_fallthru
      _
    // Predicated region
    $region38: #{tpu_custom_call.1} parent=1 // pred_check
      _
    $region39: #{tpu_custom_call.1} parent=1 // pred_check_branch
      %99 = sbr.rel (0) target = $region41
    $region40: #{tpu_custom_call.1} parent=1 // pred_region
      _
    $region41: #{tpu_custom_call.1} parent=1 // pred_fallthru
      _
    // Predicated region
    $region42: #{tpu_custom_call.1} parent=1 // pred_check
      _
    $region43: #{tpu_custom_call.1} parent=1 // pred_check_branch
      %101 = sbr.rel (0) target = $region45
    $region44: #{tpu_custom_call.1} parent=1 // pred_region
      %102 = dma.done [#allocation4], 256
    $region45: #{tpu_custom_call.1} parent=1 // pred_fallthru
      _
    // Predicated region
    $region46: #{tpu_custom_call.1} parent=1 // pred_check
      _
    $region47: #{tpu_custom_call.1} parent=1 // pred_check_branch
      %104 = sbr.rel (0) target = $region49
    $region48: #{tpu_custom_call.1} parent=1 // pred_region
      %105 = dma.done [#allocation7], 256
    $region49: #{tpu_custom_call.1} parent=1 // pred_fallthru
      _
    // Predicated region
    $region50: #{tpu_custom_call.1} parent=1 // pred_check
      _
    $region51: #{tpu_custom_call.1} parent=1 // pred_check_branch
      %107 = sbr.rel (0) target = $region53
    $region52: #{tpu_custom_call.1} parent=1 // pred_region
      %108 = dma.done [#allocation7], 512
    $region53: #{tpu_custom_call.1} parent=1 // pred_fallthru
      _
    // Predicated region
    $region54: #{tpu_custom_call.1} parent=1 // pred_check
      _
    $region55: #{tpu_custom_call.1} parent=1 // pred_check_branch
      %110 = sbr.rel (0) target = $region57
    $region56: #{tpu_custom_call.1} parent=1 // pred_region
      %111 = dma.done [#allocation10], 512
    $region57: #{tpu_custom_call.1} parent=1 // pred_fallthru
      _
    // Predicated region
    $region58: #{tpu_custom_call.1} parent=1 // pred_check
      _
    $region59: #{tpu_custom_call.1} parent=1 // pred_check_branch
      %113 = sbr.rel (0) target = $region61
    $region60: #{tpu_custom_call.1} parent=1 // pred_region
      %114 = dma.done [#allocation10], 512
    $region61: #{tpu_custom_call.1} parent=1 // pred_fallthru
      _
    // Predicated region
    $region62: #{tpu_custom_call.1} parent=1 // pred_check
      _
    $region63: #{tpu_custom_call.1} parent=1 // pred_check_branch
      %116 = sbr.rel (0) target = $region65
    $region64: #{tpu_custom_call.1} parent=1 // pred_region
      %117 = dma.done [#allocation13], 512
    $region65: #{tpu_custom_call.1} parent=1 // pred_fallthru
      _
    %v118 = vld [vmem:[#allocation3] sm:$0xff]
    %v119 = vld [vmem:[#allocation3 + $0x8] sm:$0xff]
    %v120 = vld [vmem:[#allocation6] sm:$0xff]
    %v121 = vld [vmem:[#allocation6 + $0x8] sm:$0xff]
    %v122 = vld [vmem:[%s3] sm:$0x1]
    %v124 = vlaneseq
    %v125 = vshrl.u32 %v124, 7
    %v126 = vsub.s32 0, %v125
    %v127 = vrot.slane %v122, %v126
    %vm129 = vcmask 130048
    %v131 = vsel %vm129, %v118, 0
    %v134 = vsel %vm129, %v119, 0
    %136 = vmatprep.subr.mxu0 0.0
    %137 = vmatpush1.msra.mxu0 0.0
    %138 = vmatprep.subr.mxu0 0.0
    %139 = vmatpush1.msra.mxu0 0.0
    %140 = vmatprep.subr.mxu0 0.0
    %141 = vmatpush1.msra.mxu0 0.0
    %142 = vmatprep.subr.mxu0 0.0
    %143 = vmatpush1.msra.mxu0 0.0
    %144 = vmatprep.subr.mxu0 0.0
    %145 = vmatpush1.msra.mxu0 0.0
    %146 = vmatprep.subr.mxu0 0.0
    %147 = vmatpush1.msra.mxu0 0.0
    %148 = vmatprep.subr.mxu0 0.0
    %149 = vmatpush1.msra.mxu0 0.0
    %150 = vmatprep.subr.mxu0 0.0
    %151 = vmatpush1.msra.mxu0 0.0
    %152 = vmatprep.subr.mxu0 0.0
    %153 = vmatpush1.msra.mxu0 0.0
    %154 = vmatprep.subr.mxu0 0.0
    %155 = vmatpush1.msra.mxu0 0.0
    %156 = vmatprep.subr.mxu0 0.0
    %157 = vmatpush1.msra.mxu0 0.0
    %158 = vmatprep.subr.mxu0 0.0
    %159 = vmatpush1.msra.mxu0 0.0
    %160 = vmatprep.subr.mxu0 0.0
    %161 = vmatpush1.msra.mxu0 0.0
    %162 = vmatprep.subr.mxu0 0.0
    %163 = vmatpush1.msra.mxu0 0.0
    %164 = vmatprep.subr.mxu0 0.0
    %165 = vmatpush1.msra.mxu0 %v121
    %166 = vmatprep.subr.mxu0 0.0
    %167 = vmatpush1.msra.mxu0 %v120
    %168 = vmatprep.subr.mxu0 0.0
    %169 = vmatpush2.msra.mxu0 0.0
    %170 = vmatprep.subr.mxu0 0.0
    %171 = vmatpush2.msra.mxu0 0.0
    %172 = vmatprep.subr.mxu0 0.0
    %173 = vmatpush2.msra.mxu0 0.0
    %174 = vmatprep.subr.mxu0 0.0
    %175 = vmatpush2.msra.mxu0 0.0
    %176 = vmatprep.subr.mxu0 0.0
    %177 = vmatpush2.msra.mxu0 0.0
    %178 = vmatprep.subr.mxu0 0.0
    %179 = vmatpush2.msra.mxu0 0.0
    %180 = vmatprep.subr.mxu0 0.0
    %181 = vmatpush2.msra.mxu0 0.0
    %182 = vmatprep.subr.mxu0 0.0
    %183 = vmatpush2.msra.mxu0 0.0
    %184 = vmatprep.subr.mxu0 0.0
    %185 = vmatpush2.msra.mxu0 0.0
    %186 = vmatprep.subr.mxu0 0.0
    %187 = vmatpush2.msra.mxu0 0.0
    %188 = vmatprep.subr.mxu0 0.0
    %189 = vmatpush2.msra.mxu0 0.0
    %190 = vmatprep.subr.mxu0 0.0
    %191 = vmatpush2.msra.mxu0 0.0
    %192 = vmatprep.subr.mxu0 0.0
    %193 = vmatpush2.msra.mxu0 0.0
    %194 = vmatprep.subr.mxu0 0.0
    %195 = vmatpush2.msra.mxu0 0.0
    %196 = vmatprep.subr.mxu0 0.0
    %197 = vmatpush2.msra.mxu0 0.0
    %198 = vmatprep.subr.mxu0 0.0
    %199 = vmatpush2.msra.mxu0 0.0
    %200 = vmatprep.mubr.f32.mxu0 0.0
    %201 = vmatmul.mubr.f32.gmra.mxu0 %v131
    %v202 = vpop.f32.mrf.mxu0
    %v203 = vadd.f32 %v127, %v202
    %v204 = vpop.f32.mrf.mxu0
    %205 = vmatprep.mubr.f32.mxu0 0.0
    %206 = vmatmul.mubr.f32.gmra.mxu0 %v134
    %v207 = vpop.f32.mrf.mxu0
    %v208 = vadd.f32 %v127, %v207
    %v209 = vpop.f32.mrf.mxu0
    %210 = vdwg.mxu0
    %v211 = vld [vmem:[#allocation8] sm:$0xff]
    %v212 = vld [vmem:[#allocation8 + $0x8] sm:$0xff]
    %v213 = vld [vmem:[#allocation8 + $0x10] sm:$0xff]
    %v214 = vld [vmem:[#allocation8 + $0x18] sm:$0xff]
    %v215 = vxor.u32 %v203, 2147483648
    %v216 = vmul.f32 %v215, 1.442695
    %v217 = vpow.pop %v216
    %v218 = vadd.f32 %v217, 1.0
    %v219 = vrcp.pop %v218
    %v220 = vmul.f32 1.0, %v219
    %v221 = vtanh.pop %v203
    %v222 = vmul.f32 %v220, 0.0
    %224 = vrot.lane.b32.xlu0 %v221, 32
    %v225 = vpop.permute.xlu0 %224
    %v227 = vmul.f32 %v220, %v225
    %229 = vrot.lane.b32.xlu0 %v227, 32
    %v230 = vpop.permute.xlu0 %229
    %v232 = vadd.f32 %v222, %v230
    %v233 = vtanh.pop %v232
    %235 = vrot.lane.b32.xlu0 %v233, 32
    %v236 = vpop.permute.xlu0 %235
    %v238 = vmul.f32 %v220, %v236
    %240 = vrot.lane.b32.xlu0 %v238, 64
    %v241 = vpop.permute.xlu0 %240
    %vm243 = vcmask 254976
    %244 = vst.msk [vmem:[#allocation2] sm:$0x3] %vm243, %v241
    %vm245 = vcmask 261120
    %v246 = vsel %vm245, %v241, 0
    %248 = vmatprep.subr.mxu0 0.0
    %249 = vmatpush1.msra.mxu0 0.0
    %250 = vmatprep.subr.mxu0 0.0
    %251 = vmatpush1.msra.mxu0 0.0
    %252 = vmatprep.subr.mxu0 0.0
    %253 = vmatpush1.msra.mxu0 0.0
    %254 = vmatprep.subr.mxu0 0.0
    %255 = vmatpush1.msra.mxu0 0.0
    %256 = vmatprep.subr.mxu0 0.0
    %257 = vmatpush1.msra.mxu0 0.0
    %258 = vmatprep.subr.mxu0 0.0
    %259 = vmatpush1.msra.mxu0 0.0
    %260 = vmatprep.subr.mxu0 0.0
    %261 = vmatpush1.msra.mxu0 0.0
    %262 = vmatprep.subr.mxu0 0.0
    %263 = vmatpush1.msra.mxu0 0.0
    %264 = vmatprep.subr.mxu0 0.0
    %265 = vmatpush1.msra.mxu0 0.0
    %266 = vmatprep.subr.mxu0 0.0
    %267 = vmatpush1.msra.mxu0 0.0
    %268 = vmatprep.subr.mxu0 0.0
    %269 = vmatpush1.msra.mxu0 0.0
    %270 = vmatprep.subr.mxu0 0.0
    %271 = vmatpush1.msra.mxu0 0.0
    %272 = vmatprep.subr.mxu0 0.0
    %273 = vmatpush1.msra.mxu0 %v214
    %274 = vmatprep.subr.mxu0 0.0
    %275 = vmatpush1.msra.mxu0 %v213
    %276 = vmatprep.subr.mxu0 0.0
    %277 = vmatpush1.msra.mxu0 %v212
    %278 = vmatprep.subr.mxu0 0.0
    %279 = vmatpush1.msra.mxu0 %v211
    %280 = vmatprep.subr.mxu0 0.0
    %281 = vmatpush2.msra.mxu0 0.0
    %282 = vmatprep.subr.mxu0 0.0
    %283 = vmatpush2.msra.mxu0 0.0
    %284 = vmatprep.subr.mxu0 0.0
    %285 = vmatpush2.msra.mxu0 0.0
    %286 = vmatprep.subr.mxu0 0.0
    %287 = vmatpush2.msra.mxu0 0.0
    %288 = vmatprep.subr.mxu0 0.0
    %289 = vmatpush2.msra.mxu0 0.0
    %290 = vmatprep.subr.mxu0 0.0
    %291 = vmatpush2.msra.mxu0 0.0
    %292 = vmatprep.subr.mxu0 0.0
    %293 = vmatpush2.msra.mxu0 0.0
    %294 = vmatprep.subr.mxu0 0.0
    %295 = vmatpush2.msra.mxu0 0.0
    %296 = vmatprep.subr.mxu0 0.0
    %297 = vmatpush2.msra.mxu0 0.0
    %298 = vmatprep.subr.mxu0 0.0
    %299 = vmatpush2.msra.mxu0 0.0
    %300 = vmatprep.subr.mxu0 0.0
    %301 = vmatpush2.msra.mxu0 0.0
    %302 = vmatprep.subr.mxu0 0.0
    %303 = vmatpush2.msra.mxu0 0.0
    %304 = vmatprep.subr.mxu0 0.0
    %305 = vmatpush2.msra.mxu0 0.0
    %306 = vmatprep.subr.mxu0 0.0
    %307 = vmatpush2.msra.mxu0 0.0
    %308 = vmatprep.subr.mxu0 0.0
    %309 = vmatpush2.msra.mxu0 0.0
    %310 = vmatprep.subr.mxu0 0.0
    %311 = vmatpush2.msra.mxu0 0.0
    %312 = vmatprep.mubr.f32.mxu0 0.0
    %313 = vmatmul.mubr.f32.gmra.mxu0 %v246
    %v314 = vpop.f32.mrf.mxu0
    %v315 = vadd.f32 0.0, %v314
    %v316 = vpop.f32.mrf.mxu0
    %317 = vdwg.mxu0
    %v319 = vrot.slane %v315, 6
    %v321 = vadd.f32 %v203, %v319
    %v322 = vxor.u32 %v321, 2147483648
    %v323 = vmul.f32 %v322, 1.442695
    %v324 = vpow.pop %v323
    %v325 = vadd.f32 %v324, 1.0
    %v326 = vrcp.pop %v325
    %v327 = vmul.f32 1.0, %v326
    %v328 = vtanh.pop %v321
    %v330 = vrot.slane %v232, 6
    %v332 = vmul.f32 %v327, %v330
    %334 = vrot.lane.b32.xlu0 %v328, 32
    %v335 = vpop.permute.xlu0 %334
    %v337 = vmul.f32 %v327, %v335
    %339 = vrot.lane.b32.xlu0 %v337, 32
    %v340 = vpop.permute.xlu0 %339
    %v342 = vadd.f32 %v332, %v340
    %v343 = vtanh.pop %v342
    %345 = vrot.lane.b32.xlu0 %v343, 32
    %v346 = vpop.permute.xlu0 %345
    %v348 = vmul.f32 %v327, %v346
    %350 = vrot.lane.b32.xlu0 %v348, 64
    %v351 = vpop.permute.xlu0 %350
    %vm353 = vcmask 257026
    %354 = vst.msk [vmem:[#allocation2] sm:$0xc] %vm353, %v351
    %v355 = vrot.slane %v348, 2
    %356 = vrot.lane.b32.xlu0 %v355, 64
    %v357 = vpop.permute.xlu0 %356
    %v358 = vsel %vm245, %v357, 0
    %360 = vmatprep.subr.mxu0 0.0
    %361 = vmatpush1.msra.mxu0 0.0
    %362 = vmatprep.subr.mxu0 0.0
    %363 = vmatpush1.msra.mxu0 0.0
    %364 = vmatprep.subr.mxu0 0.0
    %365 = vmatpush1.msra.mxu0 0.0
    %366 = vmatprep.subr.mxu0 0.0
    %367 = vmatpush1.msra.mxu0 0.0
    %368 = vmatprep.subr.mxu0 0.0
    %369 = vmatpush1.msra.mxu0 0.0
    %370 = vmatprep.subr.mxu0 0.0
    %371 = vmatpush1.msra.mxu0 0.0
    %372 = vmatprep.subr.mxu0 0.0
    %373 = vmatpush1.msra.mxu0 0.0
    %374 = vmatprep.subr.mxu0 0.0
    %375 = vmatpush1.msra.mxu0 0.0
    %376 = vmatprep.subr.mxu0 0.0
    %377 = vmatpush1.msra.mxu0 0.0
    %378 = vmatprep.subr.mxu0 0.0
    %379 = vmatpush1.msra.mxu0 0.0
    %380 = vmatprep.subr.mxu0 0.0
    %381 = vmatpush1.msra.mxu0 0.0
    %382 = vmatprep.subr.mxu0 0.0
    %383 = vmatpush1.msra.mxu0 0.0
    %384 = vmatprep.subr.mxu0 0.0
    %385 = vmatpush1.msra.mxu0 %v214
    %386 = vmatprep.subr.mxu0 0.0
    %387 = vmatpush1.msra.mxu0 %v213
    %388 = vmatprep.subr.mxu0 0.0
    %389 = vmatpush1.msra.mxu0 %v212
    %390 = vmatprep.subr.mxu0 0.0
    %391 = vmatpush1.msra.mxu0 %v211
    %392 = vmatprep.subr.mxu0 0.0
    %393 = vmatpush2.msra.mxu0 0.0
    %394 = vmatprep.subr.mxu0 0.0
    %395 = vmatpush2.msra.mxu0 0.0
    %396 = vmatprep.subr.mxu0 0.0
    %397 = vmatpush2.msra.mxu0 0.0
    %398 = vmatprep.subr.mxu0 0.0
    %399 = vmatpush2.msra.mxu0 0.0
    %400 = vmatprep.subr.mxu0 0.0
    %401 = vmatpush2.msra.mxu0 0.0
    %402 = vmatprep.subr.mxu0 0.0
    %403 = vmatpush2.msra.mxu0 0.0
    %404 = vmatprep.subr.mxu0 0.0
    %405 = vmatpush2.msra.mxu0 0.0
    %406 = vmatprep.subr.mxu0 0.0
    %407 = vmatpush2.msra.mxu0 0.0
    %408 = vmatprep.subr.mxu0 0.0
    %409 = vmatpush2.msra.mxu0 0.0
    %410 = vmatprep.subr.mxu0 0.0
    %411 = vmatpush2.msra.mxu0 0.0
    %412 = vmatprep.subr.mxu0 0.0
    %413 = vmatpush2.msra.mxu0 0.0
    %414 = vmatprep.subr.mxu0 0.0
    %415 = vmatpush2.msra.mxu0 0.0
    %416 = vmatprep.subr.mxu0 0.0
    %417 = vmatpush2.msra.mxu0 0.0
    %418 = vmatprep.subr.mxu0 0.0
    %419 = vmatpush2.msra.mxu0 0.0
    %420 = vmatprep.subr.mxu0 0.0
    %421 = vmatpush2.msra.mxu0 0.0
    %422 = vmatprep.subr.mxu0 0.0
    %423 = vmatpush2.msra.mxu0 0.0
    %424 = vmatprep.mubr.f32.mxu0 0.0
    %425 = vmatmul.mubr.f32.gmra.mxu0 %v358
    %v426 = vpop.f32.mrf.mxu0
    %v427 = vadd.f32 0.0, %v426
    %v428 = vpop.f32.mrf.mxu0
    %429 = vdwg.mxu0
    %v431 = vrot.slane %v427, 4
    %v433 = vadd.f32 %v203, %v431
    %v434 = vxor.u32 %v433, 2147483648
    %v435 = vmul.f32 %v434, 1.442695
    %v436 = vpow.pop %v435
    %v437 = vadd.f32 %v436, 1.0
    %v438 = vrcp.pop %v437
    %v439 = vmul.f32 1.0, %v438
    %v440 = vtanh.pop %v433
    %v442 = vrot.slane %v342, 6
    %v444 = vmul.f32 %v439, %v442
    %446 = vrot.lane.b32.xlu0 %v440, 32
    %v447 = vpop.permute.xlu0 %446
    %v449 = vmul.f32 %v439, %v447
    %451 = vrot.lane.b32.xlu0 %v449, 32
    %v452 = vpop.permute.xlu0 %451
    %v454 = vadd.f32 %v444, %v452
    %v455 = vtanh.pop %v454
    %457 = vrot.lane.b32.xlu0 %v455, 32
    %v458 = vpop.permute.xlu0 %457
    %v460 = vmul.f32 %v439, %v458
    %462 = vrot.lane.b32.xlu0 %v460, 64
    %v463 = vpop.permute.xlu0 %462
    %vm465 = vcmask 259076
    %466 = vst.msk [vmem:[#allocation2] sm:$0x30] %vm465, %v463
    %v467 = vrot.slane %v460, 4
    %468 = vrot.lane.b32.xlu0 %v467, 64
    %v469 = vpop.permute.xlu0 %468
    %v470 = vsel %vm245, %v469, 0
    %472 = vmatprep.subr.mxu0 0.0
    %473 = vmatpush1.msra.mxu0 0.0
    %474 = vmatprep.subr.mxu0 0.0
    %475 = vmatpush1.msra.mxu0 0.0
    %476 = vmatprep.subr.mxu0 0.0
    %477 = vmatpush1.msra.mxu0 0.0
    %478 = vmatprep.subr.mxu0 0.0
    %479 = vmatpush1.msra.mxu0 0.0
    %480 = vmatprep.subr.mxu0 0.0
    %481 = vmatpush1.msra.mxu0 0.0
    %482 = vmatprep.subr.mxu0 0.0
    %483 = vmatpush1.msra.mxu0 0.0
    %484 = vmatprep.subr.mxu0 0.0
    %485 = vmatpush1.msra.mxu0 0.0
    %486 = vmatprep.subr.mxu0 0.0
    %487 = vmatpush1.msra.mxu0 0.0
    %488 = vmatprep.subr.mxu0 0.0
    %489 = vmatpush1.msra.mxu0 0.0
    %490 = vmatprep.subr.mxu0 0.0
    %491 = vmatpush1.msra.mxu0 0.0
    %492 = vmatprep.subr.mxu0 0.0
    %493 = vmatpush1.msra.mxu0 0.0
    %494 = vmatprep.subr.mxu0 0.0
    %495 = vmatpush1.msra.mxu0 0.0
    %496 = vmatprep.subr.mxu0 0.0
    %497 = vmatpush1.msra.mxu0 %v214
    %498 = vmatprep.subr.mxu0 0.0
    %499 = vmatpush1.msra.mxu0 %v213
    %500 = vmatprep.subr.mxu0 0.0
    %501 = vmatpush1.msra.mxu0 %v212
    %502 = vmatprep.subr.mxu0 0.0
    %503 = vmatpush1.msra.mxu0 %v211
    %504 = vmatprep.subr.mxu0 0.0
    %505 = vmatpush2.msra.mxu0 0.0
    %506 = vmatprep.subr.mxu0 0.0
    %507 = vmatpush2.msra.mxu0 0.0
    %508 = vmatprep.subr.mxu0 0.0
    %509 = vmatpush2.msra.mxu0 0.0
    %510 = vmatprep.subr.mxu0 0.0
    %511 = vmatpush2.msra.mxu0 0.0
    %512 = vmatprep.subr.mxu0 0.0
    %513 = vmatpush2.msra.mxu0 0.0
    %514 = vmatprep.subr.mxu0 0.0
    %515 = vmatpush2.msra.mxu0 0.0
    %516 = vmatprep.subr.mxu0 0.0
    %517 = vmatpush2.msra.mxu0 0.0
    %518 = vmatprep.subr.mxu0 0.0
    %519 = vmatpush2.msra.mxu0 0.0
    %520 = vmatprep.subr.mxu0 0.0
    %521 = vmatpush2.msra.mxu0 0.0
    %522 = vmatprep.subr.mxu0 0.0
    %523 = vmatpush2.msra.mxu0 0.0
    %524 = vmatprep.subr.mxu0 0.0
    %525 = vmatpush2.msra.mxu0 0.0
    %526 = vmatprep.subr.mxu0 0.0
    %527 = vmatpush2.msra.mxu0 0.0
    %528 = vmatprep.subr.mxu0 0.0
    %529 = vmatpush2.msra.mxu0 0.0
    %530 = vmatprep.subr.mxu0 0.0
    %531 = vmatpush2.msra.mxu0 0.0
    %532 = vmatprep.subr.mxu0 0.0
    %533 = vmatpush2.msra.mxu0 0.0
    %534 = vmatprep.subr.mxu0 0.0
    %535 = vmatpush2.msra.mxu0 0.0
    %536 = vmatprep.mubr.f32.mxu0 0.0
    %537 = vmatmul.mubr.f32.gmra.mxu0 %v470
    %v538 = vpop.f32.mrf.mxu0
    %v539 = vadd.f32 0.0, %v538
    %v540 = vpop.f32.mrf.mxu0
    %541 = vdwg.mxu0
    %v543 = vrot.slane %v539, 2
    %v545 = vadd.f32 %v203, %v543
    %v546 = vxor.u32 %v545, 2147483648
    %v547 = vmul.f32 %v546, 1.442695
    %v548 = vpow.pop %v547
    %v549 = vadd.f32 %v548, 1.0
    %v550 = vrcp.pop %v549
    %v551 = vmul.f32 1.0, %v550
    %v552 = vtanh.pop %v545
    %v554 = vrot.slane %v454, 6
    %v556 = vmul.f32 %v551, %v554
    %558 = vrot.lane.b32.xlu0 %v552, 32
    %v559 = vpop.permute.xlu0 %558
    %v561 = vmul.f32 %v551, %v559
    %563 = vrot.lane.b32.xlu0 %v561, 32
    %v564 = vpop.permute.xlu0 %563
    %v566 = vadd.f32 %v556, %v564
    %v567 = vtanh.pop %v566
    %569 = vrot.lane.b32.xlu0 %v567, 32
    %v570 = vpop.permute.xlu0 %569
    %v572 = vmul.f32 %v551, %v570
    %574 = vrot.lane.b32.xlu0 %v572, 64
    %v575 = vpop.permute.xlu0 %574
    %vm577 = vcmask 261126
    %578 = vst.msk [vmem:[#allocation2] sm:$0xc0] %vm577, %v575
    %v579 = vrot.slane %v572, 6
    %580 = vrot.lane.b32.xlu0 %v579, 64
    %v581 = vpop.permute.xlu0 %580
    %v582 = vsel %vm245, %v581, 0
    %584 = vmatprep.subr.mxu0 0.0
    %585 = vmatpush1.msra.mxu0 0.0
    %586 = vmatprep.subr.mxu0 0.0
    %587 = vmatpush1.msra.mxu0 0.0
    %588 = vmatprep.subr.mxu0 0.0
    %589 = vmatpush1.msra.mxu0 0.0
    %590 = vmatprep.subr.mxu0 0.0
    %591 = vmatpush1.msra.mxu0 0.0
    %592 = vmatprep.subr.mxu0 0.0
    %593 = vmatpush1.msra.mxu0 0.0
    %594 = vmatprep.subr.mxu0 0.0
    %595 = vmatpush1.msra.mxu0 0.0
    %596 = vmatprep.subr.mxu0 0.0
    %597 = vmatpush1.msra.mxu0 0.0
    %598 = vmatprep.subr.mxu0 0.0
    %599 = vmatpush1.msra.mxu0 0.0
    %600 = vmatprep.subr.mxu0 0.0
    %601 = vmatpush1.msra.mxu0 0.0
    %602 = vmatprep.subr.mxu0 0.0
    %603 = vmatpush1.msra.mxu0 0.0
    %604 = vmatprep.subr.mxu0 0.0
    %605 = vmatpush1.msra.mxu0 0.0
    %606 = vmatprep.subr.mxu0 0.0
    %607 = vmatpush1.msra.mxu0 0.0
    %608 = vmatprep.subr.mxu0 0.0
    %609 = vmatpush1.msra.mxu0 %v214
    %610 = vmatprep.subr.mxu0 0.0
    %611 = vmatpush1.msra.mxu0 %v213
    %612 = vmatprep.subr.mxu0 0.0
    %613 = vmatpush1.msra.mxu0 %v212
    %614 = vmatprep.subr.mxu0 0.0
    %615 = vmatpush1.msra.mxu0 %v211
    %616 = vmatprep.subr.mxu0 0.0
    %617 = vmatpush2.msra.mxu0 0.0
    %618 = vmatprep.subr.mxu0 0.0
    %619 = vmatpush2.msra.mxu0 0.0
    %620 = vmatprep.subr.mxu0 0.0
    %621 = vmatpush2.msra.mxu0 0.0
    %622 = vmatprep.subr.mxu0 0.0
    %623 = vmatpush2.msra.mxu0 0.0
    %624 = vmatprep.subr.mxu0 0.0
    %625 = vmatpush2.msra.mxu0 0.0
    %626 = vmatprep.subr.mxu0 0.0
    %627 = vmatpush2.msra.mxu0 0.0
    %628 = vmatprep.subr.mxu0 0.0
    %629 = vmatpush2.msra.mxu0 0.0
    %630 = vmatprep.subr.mxu0 0.0
    %631 = vmatpush2.msra.mxu0 0.0
    %632 = vmatprep.subr.mxu0 0.0
    %633 = vmatpush2.msra.mxu0 0.0
    %634 = vmatprep.subr.mxu0 0.0
    %635 = vmatpush2.msra.mxu0 0.0
    %636 = vmatprep.subr.mxu0 0.0
    %637 = vmatpush2.msra.mxu0 0.0
    %638 = vmatprep.subr.mxu0 0.0
    %639 = vmatpush2.msra.mxu0 0.0
    %640 = vmatprep.subr.mxu0 0.0
    %641 = vmatpush2.msra.mxu0 0.0
    %642 = vmatprep.subr.mxu0 0.0
    %643 = vmatpush2.msra.mxu0 0.0
    %644 = vmatprep.subr.mxu0 0.0
    %645 = vmatpush2.msra.mxu0 0.0
    %646 = vmatprep.subr.mxu0 0.0
    %647 = vmatpush2.msra.mxu0 0.0
    %648 = vmatprep.mubr.f32.mxu0 0.0
    %649 = vmatmul.mubr.f32.gmra.mxu0 %v582
    %v650 = vpop.f32.mrf.mxu0
    %v651 = vadd.f32 0.0, %v650
    %v652 = vpop.f32.mrf.mxu0
    %653 = vdwg.mxu0
    %v654 = vadd.f32 %v208, %v651
    %v655 = vxor.u32 %v654, 2147483648
    %v656 = vmul.f32 %v655, 1.442695
    %v657 = vpow.pop %v656
    %v658 = vadd.f32 %v657, 1.0
    %v659 = vrcp.pop %v658
    %v660 = vmul.f32 1.0, %v659
    %v661 = vtanh.pop %v654
    %v663 = vrot.slane %v566, 6
    %v665 = vmul.f32 %v660, %v663
    %667 = vrot.lane.b32.xlu0 %v661, 32
    %v668 = vpop.permute.xlu0 %667
    %v670 = vmul.f32 %v660, %v668
    %672 = vrot.lane.b32.xlu0 %v670, 32
    %v673 = vpop.permute.xlu0 %672
    %v675 = vadd.f32 %v665, %v673
    %v676 = vtanh.pop %v675
    %678 = vrot.lane.b32.xlu0 %v676, 32
    %v679 = vpop.permute.xlu0 %678
    %v681 = vmul.f32 %v660, %v679
    %683 = vrot.lane.b32.xlu0 %v681, 64
    %v684 = vpop.permute.xlu0 %683
    %686 = vst.msk [vmem:[#allocation2 + $0x8] sm:$0x3] %vm243, %v684
    %v687 = vsel %vm245, %v684, 0
    %689 = vmatprep.subr.mxu0 0.0
    %690 = vmatpush1.msra.mxu0 0.0
    %691 = vmatprep.subr.mxu0 0.0
    %692 = vmatpush1.msra.mxu0 0.0
    %693 = vmatprep.subr.mxu0 0.0
    %694 = vmatpush1.msra.mxu0 0.0
    %695 = vmatprep.subr.mxu0 0.0
    %696 = vmatpush1.msra.mxu0 0.0
    %697 = vmatprep.subr.mxu0 0.0
    %698 = vmatpush1.msra.mxu0 0.0
    %699 = vmatprep.subr.mxu0 0.0
    %700 = vmatpush1.msra.mxu0 0.0
    %701 = vmatprep.subr.mxu0 0.0
    %702 = vmatpush1.msra.mxu0 0.0
    %703 = vmatprep.subr.mxu0 0.0
    %704 = vmatpush1.msra.mxu0 0.0
    %705 = vmatprep.subr.mxu0 0.0
    %706 = vmatpush1.msra.mxu0 0.0
    %707 = vmatprep.subr.mxu0 0.0
    %708 = vmatpush1.msra.mxu0 0.0
    %709 = vmatprep.subr.mxu0 0.0
    %710 = vmatpush1.msra.mxu0 0.0
    %711 = vmatprep.subr.mxu0 0.0
    %712 = vmatpush1.msra.mxu0 0.0
    %713 = vmatprep.subr.mxu0 0.0
    %714 = vmatpush1.msra.mxu0 %v214
    %715 = vmatprep.subr.mxu0 0.0
    %716 = vmatpush1.msra.mxu0 %v213
    %717 = vmatprep.subr.mxu0 0.0
    %718 = vmatpush1.msra.mxu0 %v212
    %719 = vmatprep.subr.mxu0 0.0
    %720 = vmatpush1.msra.mxu0 %v211
    %721 = vmatprep.subr.mxu0 0.0
    %722 = vmatpush2.msra.mxu0 0.0
    %723 = vmatprep.subr.mxu0 0.0
    %724 = vmatpush2.msra.mxu0 0.0
    %725 = vmatprep.subr.mxu0 0.0
    %726 = vmatpush2.msra.mxu0 0.0
    %727 = vmatprep.subr.mxu0 0.0
    %728 = vmatpush2.msra.mxu0 0.0
    %729 = vmatprep.subr.mxu0 0.0
    %730 = vmatpush2.msra.mxu0 0.0
    %731 = vmatprep.subr.mxu0 0.0
    %732 = vmatpush2.msra.mxu0 0.0
    %733 = vmatprep.subr.mxu0 0.0
    %734 = vmatpush2.msra.mxu0 0.0
    %735 = vmatprep.subr.mxu0 0.0
    %736 = vmatpush2.msra.mxu0 0.0
    %737 = vmatprep.subr.mxu0 0.0
    %738 = vmatpush2.msra.mxu0 0.0
    %739 = vmatprep.subr.mxu0 0.0
    %740 = vmatpush2.msra.mxu0 0.0
    %741 = vmatprep.subr.mxu0 0.0
    %742 = vmatpush2.msra.mxu0 0.0
    %743 = vmatprep.subr.mxu0 0.0
    %744 = vmatpush2.msra.mxu0 0.0
    %745 = vmatprep.subr.mxu0 0.0
    %746 = vmatpush2.msra.mxu0 0.0
    %747 = vmatprep.subr.mxu0 0.0
    %748 = vmatpush2.msra.mxu0 0.0
    %749 = vmatprep.subr.mxu0 0.0
    %750 = vmatpush2.msra.mxu0 0.0
    %751 = vmatprep.subr.mxu0 0.0
    %752 = vmatpush2.msra.mxu0 0.0
    %753 = vmatprep.mubr.f32.mxu0 0.0
    %754 = vmatmul.mubr.f32.gmra.mxu0 %v687
    %v755 = vpop.f32.mrf.mxu0
    %v756 = vadd.f32 0.0, %v755
    %v757 = vpop.f32.mrf.mxu0
    %758 = vdwg.mxu0
    %v760 = vrot.slane %v756, 6
    %v762 = vadd.f32 %v208, %v760
    %v763 = vxor.u32 %v762, 2147483648
    %v764 = vmul.f32 %v763, 1.442695
    %v765 = vpow.pop %v764
    %v766 = vadd.f32 %v765, 1.0
    %v767 = vrcp.pop %v766
    %v768 = vmul.f32 1.0, %v767
    %v769 = vtanh.pop %v762
    %v771 = vrot.slane %v675, 6
    %v773 = vmul.f32 %v768, %v771
    %775 = vrot.lane.b32.xlu0 %v769, 32
    %v776 = vpop.permute.xlu0 %775
    %v778 = vmul.f32 %v768, %v776
    %780 = vrot.lane.b32.xlu0 %v778, 32
    %v781 = vpop.permute.xlu0 %780
    %v783 = vadd.f32 %v773, %v781
    %v784 = vtanh.pop %v783
    %786 = vrot.lane.b32.xlu0 %v784, 32
    %v787 = vpop.permute.xlu0 %786
    %v789 = vmul.f32 %v768, %v787
    %791 = vrot.lane.b32.xlu0 %v789, 64
    %v792 = vpop.permute.xlu0 %791
    %794 = vst.msk [vmem:[#allocation2 + $0x8] sm:$0xc] %vm353, %v792
    %v795 = vrot.slane %v789, 2
    %796 = vrot.lane.b32.xlu0 %v795, 64
    %v797 = vpop.permute.xlu0 %796
    %v798 = vsel %vm245, %v797, 0
    %800 = vmatprep.subr.mxu0 0.0
    %801 = vmatpush1.msra.mxu0 0.0
    %802 = vmatprep.subr.mxu0 0.0
    %803 = vmatpush1.msra.mxu0 0.0
    %804 = vmatprep.subr.mxu0 0.0
    %805 = vmatpush1.msra.mxu0 0.0
    %806 = vmatprep.subr.mxu0 0.0
    %807 = vmatpush1.msra.mxu0 0.0
    %808 = vmatprep.subr.mxu0 0.0
    %809 = vmatpush1.msra.mxu0 0.0
    %810 = vmatprep.subr.mxu0 0.0
    %811 = vmatpush1.msra.mxu0 0.0
    %812 = vmatprep.subr.mxu0 0.0
    %813 = vmatpush1.msra.mxu0 0.0
    %814 = vmatprep.subr.mxu0 0.0
    %815 = vmatpush1.msra.mxu0 0.0
    %816 = vmatprep.subr.mxu0 0.0
    %817 = vmatpush1.msra.mxu0 0.0
    %818 = vmatprep.subr.mxu0 0.0
    %819 = vmatpush1.msra.mxu0 0.0
    %820 = vmatprep.subr.mxu0 0.0
    %821 = vmatpush1.msra.mxu0 0.0
    %822 = vmatprep.subr.mxu0 0.0
    %823 = vmatpush1.msra.mxu0 0.0
    %824 = vmatprep.subr.mxu0 0.0
    %825 = vmatpush1.msra.mxu0 %v214
    %826 = vmatprep.subr.mxu0 0.0
    %827 = vmatpush1.msra.mxu0 %v213
    %828 = vmatprep.subr.mxu0 0.0
    %829 = vmatpush1.msra.mxu0 %v212
    %830 = vmatprep.subr.mxu0 0.0
    %831 = vmatpush1.msra.mxu0 %v211
    %832 = vmatprep.subr.mxu0 0.0
    %833 = vmatpush2.msra.mxu0 0.0
    %834 = vmatprep.subr.mxu0 0.0
    %835 = vmatpush2.msra.mxu0 0.0
    %836 = vmatprep.subr.mxu0 0.0
    %837 = vmatpush2.msra.mxu0 0.0
    %838 = vmatprep.subr.mxu0 0.0
    %839 = vmatpush2.msra.mxu0 0.0
    %840 = vmatprep.subr.mxu0 0.0
    %841 = vmatpush2.msra.mxu0 0.0
    %842 = vmatprep.subr.mxu0 0.0
    %843 = vmatpush2.msra.mxu0 0.0
    %844 = vmatprep.subr.mxu0 0.0
    %845 = vmatpush2.msra.mxu0 0.0
    %846 = vmatprep.subr.mxu0 0.0
    %847 = vmatpush2.msra.mxu0 0.0
    %848 = vmatprep.subr.mxu0 0.0
    %849 = vmatpush2.msra.mxu0 0.0
    %850 = vmatprep.subr.mxu0 0.0
    %851 = vmatpush2.msra.mxu0 0.0
    %852 = vmatprep.subr.mxu0 0.0
    %853 = vmatpush2.msra.mxu0 0.0
    %854 = vmatprep.subr.mxu0 0.0
    %855 = vmatpush2.msra.mxu0 0.0
    %856 = vmatprep.subr.mxu0 0.0
    %857 = vmatpush2.msra.mxu0 0.0
    %858 = vmatprep.subr.mxu0 0.0
    %859 = vmatpush2.msra.mxu0 0.0
    %860 = vmatprep.subr.mxu0 0.0
    %861 = vmatpush2.msra.mxu0 0.0
    %862 = vmatprep.subr.mxu0 0.0
    %863 = vmatpush2.msra.mxu0 0.0
    %864 = vmatprep.mubr.f32.mxu0 0.0
    %865 = vmatmul.mubr.f32.gmra.mxu0 %v798
    %v866 = vpop.f32.mrf.mxu0
    %v867 = vadd.f32 0.0, %v866
    %v868 = vpop.f32.mrf.mxu0
    %869 = vdwg.mxu0
    %v871 = vrot.slane %v867, 4
    %v873 = vadd.f32 %v208, %v871
    %v874 = vxor.u32 %v873, 2147483648
    %v875 = vmul.f32 %v874, 1.442695
    %v876 = vpow.pop %v875
    %v877 = vadd.f32 %v876, 1.0
    %v878 = vrcp.pop %v877
    %v879 = vmul.f32 1.0, %v878
    %v880 = vtanh.pop %v873
    %v882 = vrot.slane %v783, 6
    %v884 = vmul.f32 %v879, %v882
    %886 = vrot.lane.b32.xlu0 %v880, 32
    %v887 = vpop.permute.xlu0 %886
    %v889 = vmul.f32 %v879, %v887
    %891 = vrot.lane.b32.xlu0 %v889, 32
    %v892 = vpop.permute.xlu0 %891
    %v894 = vadd.f32 %v884, %v892
    %v895 = vtanh.pop %v894
    %897 = vrot.lane.b32.xlu0 %v895, 32
    %v898 = vpop.permute.xlu0 %897
    %v900 = vmul.f32 %v879, %v898
    %902 = vrot.lane.b32.xlu0 %v900, 64
    %v903 = vpop.permute.xlu0 %902
    %905 = vst.msk [vmem:[#allocation2 + $0x8] sm:$0x30] %vm465, %v903
    %v906 = vrot.slane %v900, 4
    %907 = vrot.lane.b32.xlu0 %v906, 64
    %v908 = vpop.permute.xlu0 %907
    %v909 = vsel %vm245, %v908, 0
    %911 = vmatprep.subr.mxu0 0.0
    %912 = vmatpush1.msra.mxu0 0.0
    %913 = vmatprep.subr.mxu0 0.0
    %914 = vmatpush1.msra.mxu0 0.0
    %915 = vmatprep.subr.mxu0 0.0
    %916 = vmatpush1.msra.mxu0 0.0
    %917 = vmatprep.subr.mxu0 0.0
    %918 = vmatpush1.msra.mxu0 0.0
    %919 = vmatprep.subr.mxu0 0.0
    %920 = vmatpush1.msra.mxu0 0.0
    %921 = vmatprep.subr.mxu0 0.0
    %922 = vmatpush1.msra.mxu0 0.0
    %923 = vmatprep.subr.mxu0 0.0
    %924 = vmatpush1.msra.mxu0 0.0
    %925 = vmatprep.subr.mxu0 0.0
    %926 = vmatpush1.msra.mxu0 0.0
    %927 = vmatprep.subr.mxu0 0.0
    %928 = vmatpush1.msra.mxu0 0.0
    %929 = vmatprep.subr.mxu0 0.0
    %930 = vmatpush1.msra.mxu0 0.0
    %931 = vmatprep.subr.mxu0 0.0
    %932 = vmatpush1.msra.mxu0 0.0
    %933 = vmatprep.subr.mxu0 0.0
    %934 = vmatpush1.msra.mxu0 0.0
    %935 = vmatprep.subr.mxu0 0.0
    %936 = vmatpush1.msra.mxu0 %v214
    %937 = vmatprep.subr.mxu0 0.0
    %938 = vmatpush1.msra.mxu0 %v213
    %939 = vmatprep.subr.mxu0 0.0
    %940 = vmatpush1.msra.mxu0 %v212
    %941 = vmatprep.subr.mxu0 0.0
    %942 = vmatpush1.msra.mxu0 %v211
    %943 = vmatprep.subr.mxu0 0.0
    %944 = vmatpush2.msra.mxu0 0.0
    %945 = vmatprep.subr.mxu0 0.0
    %946 = vmatpush2.msra.mxu0 0.0
    %947 = vmatprep.subr.mxu0 0.0
    %948 = vmatpush2.msra.mxu0 0.0
    %949 = vmatprep.subr.mxu0 0.0
    %950 = vmatpush2.msra.mxu0 0.0
    %951 = vmatprep.subr.mxu0 0.0
    %952 = vmatpush2.msra.mxu0 0.0
    %953 = vmatprep.subr.mxu0 0.0
    %954 = vmatpush2.msra.mxu0 0.0
    %955 = vmatprep.subr.mxu0 0.0
    %956 = vmatpush2.msra.mxu0 0.0
    %957 = vmatprep.subr.mxu0 0.0
    %958 = vmatpush2.msra.mxu0 0.0
    %959 = vmatprep.subr.mxu0 0.0
    %960 = vmatpush2.msra.mxu0 0.0
    %961 = vmatprep.subr.mxu0 0.0
    %962 = vmatpush2.msra.mxu0 0.0
    %963 = vmatprep.subr.mxu0 0.0
    %964 = vmatpush2.msra.mxu0 0.0
    %965 = vmatprep.subr.mxu0 0.0
    %966 = vmatpush2.msra.mxu0 0.0
    %967 = vmatprep.subr.mxu0 0.0
    %968 = vmatpush2.msra.mxu0 0.0
    %969 = vmatprep.subr.mxu0 0.0
    %970 = vmatpush2.msra.mxu0 0.0
    %971 = vmatprep.subr.mxu0 0.0
    %972 = vmatpush2.msra.mxu0 0.0
    %973 = vmatprep.subr.mxu0 0.0
    %974 = vmatpush2.msra.mxu0 0.0
    %975 = vmatprep.mubr.f32.mxu0 0.0
    %976 = vmatmul.mubr.f32.gmra.mxu0 %v909
    %v977 = vpop.f32.mrf.mxu0
    %v978 = vadd.f32 0.0, %v977
    %v979 = vpop.f32.mrf.mxu0
    %980 = vdwg.mxu0
    %v982 = vrot.slane %v978, 2
    %v984 = vadd.f32 %v208, %v982
    %v985 = vxor.u32 %v984, 2147483648
    %v986 = vmul.f32 %v985, 1.442695
    %v987 = vpow.pop %v986
    %v988 = vadd.f32 %v987, 1.0
    %v989 = vrcp.pop %v988
    %v990 = vmul.f32 1.0, %v989
    %v991 = vtanh.pop %v984
    %v993 = vrot.slane %v894, 6
    %v995 = vmul.f32 %v990, %v993
    %997 = vrot.lane.b32.xlu0 %v991, 32
    %v998 = vpop.permute.xlu0 %997
    %v1000 = vmul.f32 %v990, %v998
    %1002 = vrot.lane.b32.xlu0 %v1000, 32
    %v1003 = vpop.permute.xlu0 %1002
    %v1005 = vadd.f32 %v995, %v1003
    %v1006 = vtanh.pop %v1005
    %1008 = vrot.lane.b32.xlu0 %v1006, 32
    %v1009 = vpop.permute.xlu0 %1008
    %v1011 = vmul.f32 %v990, %v1009
    %1013 = vrot.lane.b32.xlu0 %v1011, 64
    %v1014 = vpop.permute.xlu0 %1013
    %1016 = vst.msk [vmem:[#allocation2 + $0x8] sm:$0xc0] %vm577, %v1014
    %v1017 = vld [vmem:[#allocation2] sm:$0xff]
    %v1018 = vld [vmem:[#allocation2 + $0x8] sm:$0xff]
    %v1019 = vld [vmem:[#allocation9] sm:$0xff]
    %v1020 = vld [vmem:[#allocation9 + $0x8] sm:$0xff]
    %v1021 = vld [vmem:[#allocation9 + $0x10] sm:$0xff]
    %v1022 = vld [vmem:[#allocation9 + $0x18] sm:$0xff]
    %v1023 = vld [vmem:[%s5] sm:$0x1]
    %v1025 = vlaneseq
    %v1026 = vshrl.u32 %v1025, 7
    %v1027 = vsub.s32 0, %v1026
    %v1028 = vrot.slane %v1023, %v1027
    %v1031 = vsel %vm245, %v1017, 0
    %v1034 = vsel %vm245, %v1018, 0
    %1036 = vmatprep.subr.mxu0 0.0
    %1037 = vmatpush1.msra.mxu0 0.0
    %1038 = vmatprep.subr.mxu0 0.0
    %1039 = vmatpush1.msra.mxu0 0.0
    %1040 = vmatprep.subr.mxu0 0.0
    %1041 = vmatpush1.msra.mxu0 0.0
    %1042 = vmatprep.subr.mxu0 0.0
    %1043 = vmatpush1.msra.mxu0 0.0
    %1044 = vmatprep.subr.mxu0 0.0
    %1045 = vmatpush1.msra.mxu0 0.0
    %1046 = vmatprep.subr.mxu0 0.0
    %1047 = vmatpush1.msra.mxu0 0.0
    %1048 = vmatprep.subr.mxu0 0.0
    %1049 = vmatpush1.msra.mxu0 0.0
    %1050 = vmatprep.subr.mxu0 0.0
    %1051 = vmatpush1.msra.mxu0 0.0
    %1052 = vmatprep.subr.mxu0 0.0
    %1053 = vmatpush1.msra.mxu0 0.0
    %1054 = vmatprep.subr.mxu0 0.0
    %1055 = vmatpush1.msra.mxu0 0.0
    %1056 = vmatprep.subr.mxu0 0.0
    %1057 = vmatpush1.msra.mxu0 0.0
    %1058 = vmatprep.subr.mxu0 0.0
    %1059 = vmatpush1.msra.mxu0 0.0
    %1060 = vmatprep.subr.mxu0 0.0
    %1061 = vmatpush1.msra.mxu0 %v1022
    %1062 = vmatprep.subr.mxu0 0.0
    %1063 = vmatpush1.msra.mxu0 %v1021
    %1064 = vmatprep.subr.mxu0 0.0
    %1065 = vmatpush1.msra.mxu0 %v1020
    %1066 = vmatprep.subr.mxu0 0.0
    %1067 = vmatpush1.msra.mxu0 %v1019
    %1068 = vmatprep.subr.mxu0 0.0
    %1069 = vmatpush2.msra.mxu0 0.0
    %1070 = vmatprep.subr.mxu0 0.0
    %1071 = vmatpush2.msra.mxu0 0.0
    %1072 = vmatprep.subr.mxu0 0.0
    %1073 = vmatpush2.msra.mxu0 0.0
    %1074 = vmatprep.subr.mxu0 0.0
    %1075 = vmatpush2.msra.mxu0 0.0
    %1076 = vmatprep.subr.mxu0 0.0
    %1077 = vmatpush2.msra.mxu0 0.0
    %1078 = vmatprep.subr.mxu0 0.0
    %1079 = vmatpush2.msra.mxu0 0.0
    %1080 = vmatprep.subr.mxu0 0.0
    %1081 = vmatpush2.msra.mxu0 0.0
    %1082 = vmatprep.subr.mxu0 0.0
    %1083 = vmatpush2.msra.mxu0 0.0
    %1084 = vmatprep.subr.mxu0 0.0
    %1085 = vmatpush2.msra.mxu0 0.0
    %1086 = vmatprep.subr.mxu0 0.0
    %1087 = vmatpush2.msra.mxu0 0.0
    %1088 = vmatprep.subr.mxu0 0.0
    %1089 = vmatpush2.msra.mxu0 0.0
    %1090 = vmatprep.subr.mxu0 0.0
    %1091 = vmatpush2.msra.mxu0 0.0
    %1092 = vmatprep.subr.mxu0 0.0
    %1093 = vmatpush2.msra.mxu0 0.0
    %1094 = vmatprep.subr.mxu0 0.0
    %1095 = vmatpush2.msra.mxu0 0.0
    %1096 = vmatprep.subr.mxu0 0.0
    %1097 = vmatpush2.msra.mxu0 0.0
    %1098 = vmatprep.subr.mxu0 0.0
    %1099 = vmatpush2.msra.mxu0 0.0
    %1100 = vmatprep.mubr.f32.mxu0 0.0
    %1101 = vmatmul.mubr.f32.gmra.mxu0 %v1031
    %v1102 = vpop.f32.mrf.mxu0
    %v1103 = vadd.f32 %v1028, %v1102
    %v1104 = vpop.f32.mrf.mxu0
    %1105 = vmatprep.mubr.f32.mxu0 0.0
    %1106 = vmatmul.mubr.f32.gmra.mxu0 %v1034
    %v1107 = vpop.f32.mrf.mxu0
    %v1108 = vadd.f32 %v1028, %v1107
    %v1109 = vpop.f32.mrf.mxu0
    %1110 = vdwg.mxu0
    %v1111 = vmax.f32 %v1103, 0.0
    %v1112 = vmax.f32 %v1108, 0.0
    %v1113 = vld [vmem:[#allocation11] sm:$0xff]
    %v1114 = vld [vmem:[#allocation11 + $0x8] sm:$0xff]
    %v1115 = vld [vmem:[#allocation11 + $0x10] sm:$0xff]
    %v1116 = vld [vmem:[#allocation11 + $0x18] sm:$0xff]
    %v1117 = vld [vmem:[%s7] sm:$0x1]
    %v1119 = vlaneseq
    %v1120 = vshrl.u32 %v1119, 7
    %v1121 = vsub.s32 0, %v1120
    %v1122 = vrot.slane %v1117, %v1121
    %v1125 = vsel %vm245, %v1111, 0
    %v1128 = vsel %vm245, %v1112, 0
    %1130 = vmatprep.subr.mxu0 0.0
    %1131 = vmatpush1.msra.mxu0 0.0
    %1132 = vmatprep.subr.mxu0 0.0
    %1133 = vmatpush1.msra.mxu0 0.0
    %1134 = vmatprep.subr.mxu0 0.0
    %1135 = vmatpush1.msra.mxu0 0.0
    %1136 = vmatprep.subr.mxu0 0.0
    %1137 = vmatpush1.msra.mxu0 0.0
    %1138 = vmatprep.subr.mxu0 0.0
    %1139 = vmatpush1.msra.mxu0 0.0
    %1140 = vmatprep.subr.mxu0 0.0
    %1141 = vmatpush1.msra.mxu0 0.0
    %1142 = vmatprep.subr.mxu0 0.0
    %1143 = vmatpush1.msra.mxu0 0.0
    %1144 = vmatprep.subr.mxu0 0.0
    %1145 = vmatpush1.msra.mxu0 0.0
    %1146 = vmatprep.subr.mxu0 0.0
    %1147 = vmatpush1.msra.mxu0 0.0
    %1148 = vmatprep.subr.mxu0 0.0
    %1149 = vmatpush1.msra.mxu0 0.0
    %1150 = vmatprep.subr.mxu0 0.0
    %1151 = vmatpush1.msra.mxu0 0.0
    %1152 = vmatprep.subr.mxu0 0.0
    %1153 = vmatpush1.msra.mxu0 0.0
    %1154 = vmatprep.subr.mxu0 0.0
    %1155 = vmatpush1.msra.mxu0 %v1116
    %1156 = vmatprep.subr.mxu0 0.0
    %1157 = vmatpush1.msra.mxu0 %v1115
    %1158 = vmatprep.subr.mxu0 0.0
    %1159 = vmatpush1.msra.mxu0 %v1114
    %1160 = vmatprep.subr.mxu0 0.0
    %1161 = vmatpush1.msra.mxu0 %v1113
    %1162 = vmatprep.subr.mxu0 0.0
    %1163 = vmatpush2.msra.mxu0 0.0
    %1164 = vmatprep.subr.mxu0 0.0
    %1165 = vmatpush2.msra.mxu0 0.0
    %1166 = vmatprep.subr.mxu0 0.0
    %1167 = vmatpush2.msra.mxu0 0.0
    %1168 = vmatprep.subr.mxu0 0.0
    %1169 = vmatpush2.msra.mxu0 0.0
    %1170 = vmatprep.subr.mxu0 0.0
    %1171 = vmatpush2.msra.mxu0 0.0
    %1172 = vmatprep.subr.mxu0 0.0
    %1173 = vmatpush2.msra.mxu0 0.0
    %1174 = vmatprep.subr.mxu0 0.0
    %1175 = vmatpush2.msra.mxu0 0.0
    %1176 = vmatprep.subr.mxu0 0.0
    %1177 = vmatpush2.msra.mxu0 0.0
    %1178 = vmatprep.subr.mxu0 0.0
    %1179 = vmatpush2.msra.mxu0 0.0
    %1180 = vmatprep.subr.mxu0 0.0
    %1181 = vmatpush2.msra.mxu0 0.0
    %1182 = vmatprep.subr.mxu0 0.0
    %1183 = vmatpush2.msra.mxu0 0.0
    %1184 = vmatprep.subr.mxu0 0.0
    %1185 = vmatpush2.msra.mxu0 0.0
    %1186 = vmatprep.subr.mxu0 0.0
    %1187 = vmatpush2.msra.mxu0 0.0
    %1188 = vmatprep.subr.mxu0 0.0
    %1189 = vmatpush2.msra.mxu0 0.0
    %1190 = vmatprep.subr.mxu0 0.0
    %1191 = vmatpush2.msra.mxu0 0.0
    %1192 = vmatprep.subr.mxu0 0.0
    %1193 = vmatpush2.msra.mxu0 0.0
    %1194 = vmatprep.mubr.f32.mxu0 0.0
    %1195 = vmatmul.mubr.f32.gmra.mxu0 %v1125
    %v1196 = vpop.f32.mrf.mxu0
    %v1197 = vadd.f32 %v1122, %v1196
    %v1198 = vpop.f32.mrf.mxu0
    %1199 = vmatprep.mubr.f32.mxu0 0.0
    %1200 = vmatmul.mubr.f32.gmra.mxu0 %v1128
    %v1201 = vpop.f32.mrf.mxu0
    %v1202 = vadd.f32 %v1122, %v1201
    %v1203 = vpop.f32.mrf.mxu0
    %1204 = vdwg.mxu0
    %v1205 = vmax.f32 %v1197, 0.0
    %v1206 = vmax.f32 %v1202, 0.0
    %v1207 = vld [vmem:[#allocation12] sm:$0xff]
    %v1208 = vld [vmem:[#allocation12 + $0x8] sm:$0xff]
    %v1209 = vld [vmem:[#allocation12 + $0x10] sm:$0xff]
    %v1210 = vld [vmem:[#allocation12 + $0x18] sm:$0xff]
    %v1211 = vld [vmem:[%s9] sm:$0x1]
    %v1213 = vlaneseq
    %v1214 = vshrl.u32 %v1213, 7
    %v1215 = vsub.s32 0, %v1214
    %v1216 = vrot.slane %v1211, %v1215
    %v1219 = vsel %vm245, %v1205, 0
    %v1222 = vsel %vm245, %v1206, 0
    %1224 = vmatprep.subr.mxu0 0.0
    %1225 = vmatpush1.msra.mxu0 0.0
    %1226 = vmatprep.subr.mxu0 0.0
    %1227 = vmatpush1.msra.mxu0 0.0
    %1228 = vmatprep.subr.mxu0 0.0
    %1229 = vmatpush1.msra.mxu0 0.0
    %1230 = vmatprep.subr.mxu0 0.0
    %1231 = vmatpush1.msra.mxu0 0.0
    %1232 = vmatprep.subr.mxu0 0.0
    %1233 = vmatpush1.msra.mxu0 0.0
    %1234 = vmatprep.subr.mxu0 0.0
    %1235 = vmatpush1.msra.mxu0 0.0
    %1236 = vmatprep.subr.mxu0 0.0
    %1237 = vmatpush1.msra.mxu0 0.0
    %1238 = vmatprep.subr.mxu0 0.0
    %1239 = vmatpush1.msra.mxu0 0.0
    %1240 = vmatprep.subr.mxu0 0.0
    %1241 = vmatpush1.msra.mxu0 0.0
    %1242 = vmatprep.subr.mxu0 0.0
    %1243 = vmatpush1.msra.mxu0 0.0
    %1244 = vmatprep.subr.mxu0 0.0
    %1245 = vmatpush1.msra.mxu0 0.0
    %1246 = vmatprep.subr.mxu0 0.0
    %1247 = vmatpush1.msra.mxu0 0.0
    %1248 = vmatprep.subr.mxu0 0.0
    %1249 = vmatpush1.msra.mxu0 %v1210
    %1250 = vmatprep.subr.mxu0 0.0
    %1251 = vmatpush1.msra.mxu0 %v1209
    %1252 = vmatprep.subr.mxu0 0.0
    %1253 = vmatpush1.msra.mxu0 %v1208
    %1254 = vmatprep.subr.mxu0 0.0
    %1255 = vmatpush1.msra.mxu0 %v1207
    %1256 = vmatprep.subr.mxu0 0.0
    %1257 = vmatpush2.msra.mxu0 0.0
    %1258 = vmatprep.subr.mxu0 0.0
    %1259 = vmatpush2.msra.mxu0 0.0
    %1260 = vmatprep.subr.mxu0 0.0
    %1261 = vmatpush2.msra.mxu0 0.0
    %1262 = vmatprep.subr.mxu0 0.0
    %1263 = vmatpush2.msra.mxu0 0.0
    %1264 = vmatprep.subr.mxu0 0.0
    %1265 = vmatpush2.msra.mxu0 0.0
    %1266 = vmatprep.subr.mxu0 0.0
    %1267 = vmatpush2.msra.mxu0 0.0
    %1268 = vmatprep.subr.mxu0 0.0
    %1269 = vmatpush2.msra.mxu0 0.0
    %1270 = vmatprep.subr.mxu0 0.0
    %1271 = vmatpush2.msra.mxu0 0.0
    %1272 = vmatprep.subr.mxu0 0.0
    %1273 = vmatpush2.msra.mxu0 0.0
    %1274 = vmatprep.subr.mxu0 0.0
    %1275 = vmatpush2.msra.mxu0 0.0
    %1276 = vmatprep.subr.mxu0 0.0
    %1277 = vmatpush2.msra.mxu0 0.0
    %1278 = vmatprep.subr.mxu0 0.0
    %1279 = vmatpush2.msra.mxu0 0.0
    %1280 = vmatprep.subr.mxu0 0.0
    %1281 = vmatpush2.msra.mxu0 0.0
    %1282 = vmatprep.subr.mxu0 0.0
    %1283 = vmatpush2.msra.mxu0 0.0
    %1284 = vmatprep.subr.mxu0 0.0
    %1285 = vmatpush2.msra.mxu0 0.0
    %1286 = vmatprep.subr.mxu0 0.0
    %1287 = vmatpush2.msra.mxu0 0.0
    %1288 = vmatprep.mubr.f32.mxu0 0.0
    %1289 = vmatmul.mubr.f32.gmra.mxu0 %v1219
    %v1290 = vpop.f32.mrf.mxu0
    %v1291 = vadd.f32 %v1216, %v1290
    %v1292 = vpop.f32.mrf.mxu0
    %1293 = vmatprep.mubr.f32.mxu0 0.0
    %1294 = vmatmul.mubr.f32.gmra.mxu0 %v1222
    %v1295 = vpop.f32.mrf.mxu0
    %v1296 = vadd.f32 %v1216, %v1295
    %v1297 = vpop.f32.mrf.mxu0
    %1298 = vdwg.mxu0
    %v1299 = vxor.u32 %v1291, 2147483648
    %v1300 = vxor.u32 %v1296, 2147483648
    %v1301 = vmul.f32 %v1299, 1.442695
    %v1302 = vpow.pop %v1301
    %v1303 = vmul.f32 %v1300, 1.442695
    %v1304 = vpow.pop %v1303
    %v1305 = vadd.f32 %v1302, 1.0
    %v1306 = vadd.f32 %v1304, 1.0
    %v1307 = vrcp.pop %v1305
    %v1308 = vmul.f32 1.0, %v1307
    %v1309 = vrcp.pop %v1306
    %v1310 = vmul.f32 1.0, %v1309
    %1311 = vst [vmem:[#allocation14] sm:$0xff] %v1308
    %1312 = vst [vmem:[#allocation14 + $0x8] sm:$0xff] %v1310
    // Predicated region
    $region66: #{tpu_custom_call.1} parent=1 // pred_check
      _
    $region67: #{tpu_custom_call.1} parent=1 // pred_check_branch
      %1314 = sbr.rel (0) target = $region69
    $region68: #{tpu_custom_call.1} parent=1 // pred_region
      %s1316 = ssub.s32 256, 256
      %1317 = vsyncadd [#allocation5], %s1316
      %s1318 = sshll.u32 [#allocation14], 4
      %s1319 = int_to_ptr.vmem [resolvable:$true] %s1318
      %1324 = dma.vmem_to_hbm [thread:$0]  %s1319, 256, %s10, [#allocation5], 128, 128, 8
    $region69: #{tpu_custom_call.1} parent=1 // pred_fallthru
      _
    // Predicated region
    $region70: #{tpu_custom_call.1} parent=1 // pred_check
      _
    $region71: #{tpu_custom_call.1} parent=1 // pred_check_branch
      %1326 = sbr.rel (0) target = $region73
    $region72: #{tpu_custom_call.1} parent=1 // pred_region
      %1327 = dma.done [#allocation5], 256
    $region73: #{tpu_custom_call.1} parent=1 // pred_fallthru
      _
    %1328 = vsyncpa [#allocation4], 1
    %1329 = vsyncpa [#allocation7], 1
    %1330 = vsyncpa [#allocation10], 1
    %1331 = vsyncpa [#allocation13], 1
    %1332 = vsyncpa [#allocation5], 1

</llo_original>
